<compile_context>
chip_gen: v5e
topology: v5e:2x2
jax: 0.10.0
libtpu: 0.0.40
codegen_flags: <defaults>
</compile_context>

<pallas_src>
import jax
import jax.numpy as jnp
from jax.experimental import pallas as pl
from jax.experimental.pallas import tpu as pltpu


def _cdiv(a, b):
    return -(-a // b)


def _round_up(x, m):
    return _cdiv(x, m) * m


def _pad2(a, rows, cols):
    r, c = a.shape
    if (r, c) == (rows, cols):
        return a
    return jnp.pad(a, ((0, rows - r), (0, cols - c)))


# ---------------------------------------------------------------------------
# Kernel
# ---------------------------------------------------------------------------
def grui_cell_kernel(x_ref, d_ref, h_ref,
                     wx_ref, bx_ref, wh_ref, whh_ref, wbeta_ref, bbeta_ref,
                     out_ref):
    f32 = jnp.float32
    hp = whh_ref.shape[1]          # padded hidden size (static Python int)
    wdt = wx_ref.dtype             # MXU operand dtype (f32 or bf16)

    x = x_ref[...]
    delta = d_ref[...]
    h = h_ref[...].astype(f32)

    # beta = exp(min(0, Delta @ W_beta + b_beta));  H <- beta * H
    beta_lin = (jnp.dot(delta.astype(wdt), wbeta_ref[...],
                        preferred_element_type=f32) + bbeta_ref[...])
    beta = jnp.exp(jnp.minimum(0.0, beta_lin))
    hb = beta * h

    # Fused gate matmuls (wide N keeps MXU pushes full, f32 accumulation).
    x_lin = (jnp.dot(x.astype(wdt), wx_ref[...],
                     preferred_element_type=f32) + bx_ref[...])      # [TB, 3*hp]
    h_lin = jnp.dot(hb.astype(wdt), wh_ref[...],
                    preferred_element_type=f32)                      # [TB, 2*hp]

    z = jax.nn.sigmoid(x_lin[:, :hp] + h_lin[:, :hp])
    r = jax.nn.sigmoid(x_lin[:, hp:2 * hp] + h_lin[:, hp:2 * hp])
    h_tilde = jnp.tanh(
        x_lin[:, 2 * hp:]
        + jnp.dot((r * hb).astype(wdt), whh_ref[...],
                  preferred_element_type=f32))

    out_ref[...] = (z * hb + (1.0 - z) * h_tilde).astype(out_ref.dtype)


# ---------------------------------------------------------------------------
# One-time weight preparation (hoisted out of the per-step call)
# ---------------------------------------------------------------------------
def prepare_params(params, mxu_dtype=None):
    """Fuse, pad and cast the GRUI weights once.  Call this outside the step loop."""
    num_inputs, num_hiddens = params["W_xz"].shape
    i_pad = _round_up(num_inputs, 128)
    h_pad = _round_up(num_hiddens, 128)
    w_dtype = jnp.dtype(mxu_dtype) if mxu_dtype is not None else params["W_xz"].dtype

    wx = jnp.concatenate(
        [_pad2(params["W_xz"], i_pad, h_pad),
         _pad2(params["W_xr"], i_pad, h_pad),
         _pad2(params["W_xh"], i_pad, h_pad)], axis=1).astype(w_dtype)
    bx = jnp.concatenate(
        [_pad2(params["b_z"], 1, h_pad),
         _pad2(params["b_r"], 1, h_pad),
         _pad2(params["b_h"], 1, h_pad)], axis=1).astype(jnp.float32)
    wh = jnp.concatenate(
        [_pad2(params["W_hz"], h_pad, h_pad),
         _pad2(params["W_hr"], h_pad, h_pad)], axis=1).astype(w_dtype)
    whh = _pad2(params["W_hh"], h_pad, h_pad).astype(w_dtype)
    wbeta = _pad2(params["W_beta"], i_pad, h_pad).astype(w_dtype)
    bbeta = _pad2(params["b_beta"], 1, h_pad).astype(jnp.float32)

    return {
        "wx": wx, "bx": bx, "wh": wh, "whh": whh, "wbeta": wbeta, "bbeta": bbeta,
        "num_inputs": num_inputs, "num_hiddens": num_hiddens,
        "i_pad": i_pad, "h_pad": h_pad, "w_dtype": w_dtype,
    }


def _vmem_capacity_bytes():
    # Generation-aware physical VMEM (64 MiB/TC on v7x, 128 MiB on v5e/v6e).
    try:
        return int(pltpu.get_tpu_info().vmem_capacity_bytes)
    except Exception:
        return 64 * 1024 * 1024   # conservative fallback


# ---------------------------------------------------------------------------
# Wrapper
# ---------------------------------------------------------------------------
def grui_cell(x, delta, h, prepared, *, block_batch=256):
    """Pallas GRUICell forward.

    x/delta: [B, num_inputs], h: [B, num_hiddens]; `prepared` from prepare_params().
    Activations keep their native dtype end-to-end; gating math is f32 in-register.
    """
    batch, num_inputs = x.shape
    num_hiddens = h.shape[1]
    assert num_inputs == prepared["num_inputs"] and num_hiddens == prepared["num_hiddens"]

    i_pad, h_pad = prepared["i_pad"], prepared["h_pad"]
    wx, bx = prepared["wx"], prepared["bx"]
    wh, whh = prepared["wh"], prepared["whh"]
    wbeta, bbeta = prepared["wbeta"], prepared["bbeta"]
    w_dtype = prepared["w_dtype"]

    # --- batch tiling: minimal padding, prefer an even grid for v7x megacore.
    num_steps = max(1, _cdiv(batch, block_batch))
    if num_steps > 1 and num_steps % 2 == 1:
        num_steps += 1                      # keep both TensorCores busy on v7x
    tb = _round_up(_cdiv(batch, num_steps), 8)
    b_pad = num_steps * tb
    grid = (num_steps,)

    # --- activations: pad only, keep native dtype (halves HBM DMA for bf16).
    xp = _pad2(x, b_pad, i_pad)
    dp = _pad2(delta, b_pad, i_pad)
    hpd = _pad2(h, b_pad, h_pad)
    out_dtype = h.dtype

    # --- VMEM accounting (weights x n_buffers + double-buffered activation
    #     tiles + f32 intermediates), clamped to physical capacity - headroom.
    w_item = jnp.dtype(w_dtype).itemsize
    x_item = jnp.dtype(xp.dtype).itemsize
    d_item = jnp.dtype(dp.dtype).itemsize
    h_item = jnp.dtype(hpd.dtype).itemsize
    o_item = jnp.dtype(out_dtype).itemsize
    weight_elem_bytes = ((wx.size + wh.size + whh.size + wbeta.size) * w_item
                         + (bx.size + bbeta.size) * 4)
    act_bytes = 2 * tb * (i_pad * (x_item + d_item) + h_pad * (h_item + o_item))
    tmp_bytes = tb * (12 * h_pad + 2 * i_pad) * 4
    cap = _vmem_capacity_bytes()

    batch_spec_i = pl.BlockSpec((tb, i_pad), lambda i: (i, 0))
    batch_spec_h = pl.BlockSpec((tb, h_pad), lambda i: (i, 0))

    def build(single_buffer_weights):
        n_wbuf = 1 if single_buffer_weights else 2
        needed = n_wbuf * weight_elem_bytes + act_bytes + tmp_bytes
        vmem_limit = max(int(needed * 5 // 4), 32 * 1024 * 1024)
        vmem_limit = int(min(vmem_limit, cap - 8 * 1024 * 1024))
        vmem_limit = max(vmem_limit, 16 * 1024 * 1024)

        def resident(shape):
            # Constant index_map -> DMA'd once; Buffered(1) -> single VMEM copy.
            if single_buffer_weights:
                return pl.BlockSpec(shape, lambda i: (0, 0),
                                    pipeline_mode=pl.Buffered(1))
            return pl.BlockSpec(shape, lambda i: (0, 0))

        return pl.pallas_call(
            grui_cell_kernel,
            out_shape=jax.ShapeDtypeStruct((b_pad, h_pad), out_dtype),
            grid=grid,
            in_specs=[
                batch_spec_i,                     # X
                batch_spec_i,                     # Delta
                batch_spec_h,                     # H
                resident((i_pad, 3 * h_pad)),     # [W_xz | W_xr | W_xh]
                resident((1, 3 * h_pad)),         # [b_z | b_r | b_h]
                resident((h_pad, 2 * h_pad)),     # [W_hz | W_hr]
                resident((h_pad, h_pad)),         # W_hh
                resident((i_pad, h_pad)),         # W_beta
                resident((1, h_pad)),             # b_beta
            ],
            out_specs=batch_spec_h,
            compiler_params=pltpu.CompilerParams(
                dimension_semantics=("parallel",),
                vmem_limit_bytes=vmem_limit,
            ),
        )

    args = (xp, dp, hpd, wx, bx, wh, whh, wbeta, bbeta)
    try:
        out_padded = build(True)(*args)
    except Exception:
        # Fallback if this runtime rejects pipeline_mode=Buffered(1).
        out_padded = build(False)(*args)

    return out_padded[:batch, :num_hiddens]


# ---------------------------------------------------------------------------
# Parameter init + pure-JAX reference (for sanity checking)
# ---------------------------------------------------------------------------
def init_params(key, num_inputs, num_hiddens, dtype=jnp.float32):
    ks = jax.random.split(key, 7)

    def normal(k, shape):
        return (jax.random.normal(k, shape, dtype=jnp.float32) * 0.01).astype(dtype)

    zeros_b = jnp.zeros((1, num_hiddens), dtype=jnp.float32)
    return {
        "W_xz": normal(ks[0], (num_inputs, num_hiddens)),
        "W_hz": normal(ks[1], (num_hiddens, num_hiddens)),
        "b_z": zeros_b,
        "W_xr": normal(ks[2], (num_inputs, num_hiddens)),
        "W_hr": normal(ks[3], (num_hiddens, num_hiddens)),
        "b_r": zeros_b,
        "W_xh": normal(ks[4], (num_inputs, num_hiddens)),
        "W_hh": normal(ks[5], (num_hiddens, num_hiddens)),
        "b_h": zeros_b,
        "W_beta": normal(ks[6], (num_inputs, num_hiddens)),
        "b_beta": zeros_b,
    }


def grui_cell_ref(x, delta, h, params):
    f32 = lambda a: a.astype(jnp.float32)
    beta = jnp.exp(jnp.minimum(0.0, delta @ f32(params["W_beta"]) + params["b_beta"]))
    h = beta * h
    z = jax.nn.sigmoid(x @ f32(params["W_xz"]) + h @ f32(params["W_hz"]) + params["b_z"])
    r = jax.nn.sigmoid(x @ f32(params["W_xr"]) + h @ f32(params["W_hr"]) + params["b_r"])
    h_tilde = jnp.tanh(x @ f32(params["W_xh"]) + (r * h) @ f32(params["W_hh"]) + params["b_h"])
    return z * h + (1.0 - z) * h_tilde


def _check(batch, num_inputs, num_hiddens, seed, block_batch):
    key = jax.random.PRNGKey(seed)
    k_x, k_d, k_h, k_p = jax.random.split(key, 4)
    x = jax.random.normal(k_x, (batch, num_inputs), dtype=jnp.float32)
    delta = jnp.abs(jax.random.normal(k_d, (batch, num_inputs), dtype=jnp.float32))
    h = jax.random.normal(k_h, (batch, num_hiddens), dtype=jnp.float32)
    params = init_params(k_p, num_inputs, num_hiddens)
    ref = grui_cell_ref(x, delta, h, params)

    # f32 MXU path (exact-ish).
    prep_f32 = prepare_params(params)
    out = jax.block_until_ready(
        grui_cell(x, delta, h, prep_f32, block_batch=block_batch))
    assert out.shape == (batch, num_hiddens)
    err = float(jnp.max(jnp.abs(out - ref)))
    assert jnp.allclose(out, ref, atol=1e-5, rtol=1e-5), err

    # bf16 MXU path (f32 accumulation): looser tolerance.
    prep_bf16 = prepare_params(params, mxu_dtype=jnp.bfloat16)
    out_bf16 = jax.block_until_ready(
        grui_cell(x, delta, h, prep_bf16, block_batch=block_batch))
    err_bf16 = float(jnp.max(jnp.abs(out_bf16 - ref)))
    assert jnp.allclose(out_bf16, ref, atol=3e-2, rtol=3e-2), err_bf16


if __name__ == "__main__":
    # Small canonical shape (single grid step, padded to (8, 128)).
    _check(batch=8, num_inputs=16, num_hiddens=32, seed=0, block_batch=256)
    # Multi-step batch grid: exercises minimal-padding tb selection and the
    # even grid split (272 rows -> 4 steps of 72 rows instead of 512 padded).
    _check(batch=272, num_inputs=40, num_hiddens=96, seed=1, block_batch=128)
    print("KERNEL_OK")
</pallas_src>

<mosaic_0001>
module attributes {stable_mosaic.version = 11 : i64} {
  func.func @grui_cell_kernel(%arg0: i32, %arg1: memref<8x128xf32, #tpu.memory_space<vmem>>, %arg2: memref<8x128xf32, #tpu.memory_space<vmem>>, %arg3: memref<8x128xf32, #tpu.memory_space<vmem>>, %arg4: memref<128x384xf32, #tpu.memory_space<vmem>>, %arg5: memref<1x384xf32, #tpu.memory_space<vmem>>, %arg6: memref<128x256xf32, #tpu.memory_space<vmem>>, %arg7: memref<128x128xf32, #tpu.memory_space<vmem>>, %arg8: memref<128x128xf32, #tpu.memory_space<vmem>>, %arg9: memref<1x128xf32, #tpu.memory_space<vmem>>, %arg10: memref<8x128xf32, #tpu.memory_space<vmem>>) attributes {dimension_semantics = [#tpu.dimension_semantics<parallel>], iteration_bounds = array<i64: 1>, scalar_prefetch = 0 : i64, scratch_operands = 0 : i64, tpu.core_type = #tpu.core_type<tc>, window_params = [{transform_indices = @transform_0, window_bounds = array<i64: 8, 128>}, {transform_indices = @transform_1, window_bounds = array<i64: 8, 128>}, {transform_indices = @transform_2, window_bounds = array<i64: 8, 128>}, {pipeline_mode = #tpu.pipeline_mode<synchronous>, transform_indices = @transform_3, window_bounds = array<i64: 128, 384>}, {pipeline_mode = #tpu.pipeline_mode<synchronous>, transform_indices = @transform_4, window_bounds = array<i64: 1, 384>}, {pipeline_mode = #tpu.pipeline_mode<synchronous>, transform_indices = @transform_5, window_bounds = array<i64: 128, 256>}, {pipeline_mode = #tpu.pipeline_mode<synchronous>, transform_indices = @transform_6, window_bounds = array<i64: 128, 128>}, {pipeline_mode = #tpu.pipeline_mode<synchronous>, transform_indices = @transform_7, window_bounds = array<i64: 128, 128>}, {pipeline_mode = #tpu.pipeline_mode<synchronous>, transform_indices = @transform_8, window_bounds = array<i64: 1, 128>}, {transform_indices = @transform_9, window_bounds = array<i64: 8, 128>}]} {
    %c0 = arith.constant 0 : index
    %c0_0 = arith.constant 0 : index
    %0 = vector.load %arg1[%c0, %c0_0] : memref<8x128xf32, #tpu.memory_space<vmem>>, vector<8x128xf32>
    %c0_1 = arith.constant 0 : index
    %c0_2 = arith.constant 0 : index
    %1 = vector.load %arg2[%c0_1, %c0_2] : memref<8x128xf32, #tpu.memory_space<vmem>>, vector<8x128xf32>
    %c0_3 = arith.constant 0 : index
    %c0_4 = arith.constant 0 : index
    %2 = vector.load %arg3[%c0_3, %c0_4] : memref<8x128xf32, #tpu.memory_space<vmem>>, vector<8x128xf32>
    %c0_5 = arith.constant 0 : index
    %c0_6 = arith.constant 0 : index
    %3 = vector.load %arg8[%c0_5, %c0_6] : memref<128x128xf32, #tpu.memory_space<vmem>>, vector<128x128xf32>
    %cst = arith.constant dense<0.000000e+00> : vector<8x128xf32>
    %4 = tpu.matmul %1, %3, %cst {dimension_numbers = #tpu.dot_dimension_numbers<[1], [0], [0], [1], [0, 0, 1, 1], [], []>} : vector<8x128xf32>, vector<128x128xf32>, vector<8x128xf32> -> vector<8x128xf32>
    %c0_7 = arith.constant 0 : index
    %c0_8 = arith.constant 0 : index
    %5 = vector.load %arg9[%c0_7, %c0_8] : memref<1x128xf32, #tpu.memory_space<vmem>>, vector<1x128xf32>
    %6 = vector.broadcast %5 : vector<1x128xf32> to vector<8x128xf32>
    %7 = arith.addf %4, %6 : vector<8x128xf32>
    %cst_9 = arith.constant 0.000000e+00 : f32
    %8 = vector.broadcast %cst_9 : f32 to vector<8x128xf32>
    %9 = arith.minimumf %8, %7 : vector<8x128xf32>
    %10 = math.exp %9 : vector<8x128xf32>
    %11 = arith.mulf %10, %2 : vector<8x128xf32>
    %c0_10 = arith.constant 0 : index
    %c0_11 = arith.constant 0 : index
    %12 = vector.load %arg4[%c0_10, %c0_11] : memref<128x384xf32, #tpu.memory_space<vmem>>, vector<128x384xf32>
    %cst_12 = arith.constant dense<0.000000e+00> : vector<8x384xf32>
    %13 = tpu.matmul %0, %12, %cst_12 {dimension_numbers = #tpu.dot_dimension_numbers<[1], [0], [0], [1], [0, 0, 1, 1], [], []>} : vector<8x128xf32>, vector<128x384xf32>, vector<8x384xf32> -> vector<8x384xf32>
    %c0_13 = arith.constant 0 : index
    %c0_14 = arith.constant 0 : index
    %14 = vector.load %arg5[%c0_13, %c0_14] : memref<1x384xf32, #tpu.memory_space<vmem>>, vector<1x384xf32>
    %15 = vector.broadcast %14 : vector<1x384xf32> to vector<8x384xf32>
    %16 = arith.addf %13, %15 : vector<8x384xf32>
    %c0_15 = arith.constant 0 : index
    %c0_16 = arith.constant 0 : index
    %17 = vector.load %arg6[%c0_15, %c0_16] : memref<128x256xf32, #tpu.memory_space<vmem>>, vector<128x256xf32>
    %cst_17 = arith.constant dense<0.000000e+00> : vector<8x256xf32>
    %18 = tpu.matmul %11, %17, %cst_17 {dimension_numbers = #tpu.dot_dimension_numbers<[1], [0], [0], [1], [0, 0, 1, 1], [], []>} : vector<8x128xf32>, vector<128x256xf32>, vector<8x256xf32> -> vector<8x256xf32>
    %19 = vector.extract_strided_slice %16 {offsets = [0, 0], sizes = [8, 128], strides = [1, 1]} : vector<8x384xf32> to vector<8x128xf32>
    %20 = vector.extract_strided_slice %18 {offsets = [0, 0], sizes = [8, 128], strides = [1, 1]} : vector<8x256xf32> to vector<8x128xf32>
    %21 = arith.addf %19, %20 : vector<8x128xf32>
    %22 = arith.negf %21 : vector<8x128xf32>
    %23 = math.exp %22 : vector<8x128xf32>
    %cst_18 = arith.constant 1.000000e+00 : f32
    %24 = vector.broadcast %cst_18 : f32 to vector<8x128xf32>
    %25 = arith.addf %24, %23 : vector<8x128xf32>
    %26 = arith.divf %24, %25 : vector<8x128xf32>
    %27 = vector.extract_strided_slice %16 {offsets = [0, 128], sizes = [8, 128], strides = [1, 1]} : vector<8x384xf32> to vector<8x128xf32>
    %28 = vector.extract_strided_slice %18 {offsets = [0, 128], sizes = [8, 128], strides = [1, 1]} : vector<8x256xf32> to vector<8x128xf32>
    %29 = arith.addf %27, %28 : vector<8x128xf32>
    %30 = arith.negf %29 : vector<8x128xf32>
    %31 = math.exp %30 : vector<8x128xf32>
    %cst_19 = arith.constant 1.000000e+00 : f32
    %32 = vector.broadcast %cst_19 : f32 to vector<8x128xf32>
    %33 = arith.addf %32, %31 : vector<8x128xf32>
    %34 = arith.divf %32, %33 : vector<8x128xf32>
    %35 = vector.extract_strided_slice %16 {offsets = [0, 256], sizes = [8, 128], strides = [1, 1]} : vector<8x384xf32> to vector<8x128xf32>
    %36 = arith.mulf %34, %11 : vector<8x128xf32>
    %c0_20 = arith.constant 0 : index
    %c0_21 = arith.constant 0 : index
    %37 = vector.load %arg7[%c0_20, %c0_21] : memref<128x128xf32, #tpu.memory_space<vmem>>, vector<128x128xf32>
    %cst_22 = arith.constant dense<0.000000e+00> : vector<8x128xf32>
    %38 = tpu.matmul %36, %37, %cst_22 {dimension_numbers = #tpu.dot_dimension_numbers<[1], [0], [0], [1], [0, 0, 1, 1], [], []>} : vector<8x128xf32>, vector<128x128xf32>, vector<8x128xf32> -> vector<8x128xf32>
    %39 = arith.addf %35, %38 : vector<8x128xf32>
    %40 = math.tanh %39 : vector<8x128xf32>
    %41 = arith.mulf %26, %11 : vector<8x128xf32>
    %cst_23 = arith.constant 1.000000e+00 : f32
    %42 = vector.broadcast %cst_23 : f32 to vector<8x128xf32>
    %43 = arith.subf %42, %26 : vector<8x128xf32>
    %44 = arith.mulf %43, %40 : vector<8x128xf32>
    %45 = arith.addf %41, %44 : vector<8x128xf32>
    %c0_24 = arith.constant 0 : index
    %c0_25 = arith.constant 0 : index
    %46 = vector.load %arg10[%c0_24, %c0_25] : memref<8x128xf32, #tpu.memory_space<vmem>>, vector<8x128xf32>
    tpu.vector_store %arg10[%c0_24, %c0_25], %45 {strides = array<i32>} : memref<8x128xf32, #tpu.memory_space<vmem>>, vector<8x128xf32>,
    return
  }
  func.func @transform_0(%arg0: i32) -> (i32, i32) {
    %c0_i32 = arith.constant 0 : i32
    %c0_i32_0 = arith.constant 0 : i32
    return %arg0, %c0_i32 : i32, i32
  }
  func.func @transform_1(%arg0: i32) -> (i32, i32) {
    %c0_i32 = arith.constant 0 : i32
    %c0_i32_0 = arith.constant 0 : i32
    return %arg0, %c0_i32 : i32, i32
  }
  func.func @transform_2(%arg0: i32) -> (i32, i32) {
    %c0_i32 = arith.constant 0 : i32
    %c0_i32_0 = arith.constant 0 : i32
    return %arg0, %c0_i32 : i32, i32
  }
  func.func @transform_3(%arg0: i32) -> (i32, i32) {
    %c0_i32 = arith.constant 0 : i32
    %c0_i32_0 = arith.constant 0 : i32
    %c0_i32_1 = arith.constant 0 : i32
    return %c0_i32, %c0_i32_0 : i32, i32
  }
  func.func @transform_4(%arg0: i32) -> (i32, i32) {
    %c0_i32 = arith.constant 0 : i32
    %c0_i32_0 = arith.constant 0 : i32
    %c0_i32_1 = arith.constant 0 : i32
    return %c0_i32, %c0_i32_0 : i32, i32
  }
  func.func @transform_5(%arg0: i32) -> (i32, i32) {
    %c0_i32 = arith.constant 0 : i32
    %c0_i32_0 = arith.constant 0 : i32
    %c0_i32_1 = arith.constant 0 : i32
    return %c0_i32, %c0_i32_0 : i32, i32
  }
  func.func @transform_6(%arg0: i32) -> (i32, i32) {
    %c0_i32 = arith.constant 0 : i32
    %c0_i32_0 = arith.constant 0 : i32
    %c0_i32_1 = arith.constant 0 : i32
    return %c0_i32, %c0_i32_0 : i32, i32
  }
  func.func @transform_7(%arg0: i32) -> (i32, i32) {
    %c0_i32 = arith.constant 0 : i32
    %c0_i32_0 = arith.constant 0 : i32
    %c0_i32_1 = arith.constant 0 : i32
    return %c0_i32, %c0_i32_0 : i32, i32
  }
  func.func @transform_8(%arg0: i32) -> (i32, i32) {
    %c0_i32 = arith.constant 0 : i32
    %c0_i32_0 = arith.constant 0 : i32
    %c0_i32_1 = arith.constant 0 : i32
    return %c0_i32, %c0_i32_0 : i32, i32
  }
  func.func @transform_9(%arg0: i32) -> (i32, i32) {
    %c0_i32 = arith.constant 0 : i32
    %c0_i32_0 = arith.constant 0 : i32
    return %arg0, %c0_i32 : i32, i32
  }
}

module attributes {stable_mosaic.version = 11 : i64} {
  func.func @grui_cell_kernel(%arg0: i32, %arg1: memref<8x128xf32, #tpu.memory_space<vmem>>, %arg2: memref<8x128xf32, #tpu.memory_space<vmem>>, %arg3: memref<8x128xf32, #tpu.memory_space<vmem>>, %arg4: memref<128x384xf32, #tpu.memory_space<vmem>>, %arg5: memref<1x384xf32, #tpu.memory_space<vmem>>, %arg6: memref<128x256xf32, #tpu.memory_space<vmem>>, %arg7: memref<128x128xf32, #tpu.memory_space<vmem>>, %arg8: memref<128x128xf32, #tpu.memory_space<vmem>>, %arg9: memref<1x128xf32, #tpu.memory_space<vmem>>, %arg10: memref<8x128xf32, #tpu.memory_space<vmem>>) attributes {dimension_semantics = [#tpu.dimension_semantics<parallel>], iteration_bounds = array<i64: 1>, scalar_prefetch = 0 : i64, scratch_operands = 0 : i64, tpu.core_type = #tpu.core_type<tc>, window_params = [{transform_indices = @transform_0, window_bounds = array<i64: 8, 128>}, {transform_indices = @transform_1, window_bounds = array<i64: 8, 128>}, {transform_indices = @transform_2, window_bounds = array<i64: 8, 128>}, {pipeline_mode = #tpu.pipeline_mode<synchronous>, transform_indices = @transform_3, window_bounds = array<i64: 128, 384>}, {pipeline_mode = #tpu.pipeline_mode<synchronous>, transform_indices = @transform_4, window_bounds = array<i64: 1, 384>}, {pipeline_mode = #tpu.pipeline_mode<synchronous>, transform_indices = @transform_5, window_bounds = array<i64: 128, 256>}, {pipeline_mode = #tpu.pipeline_mode<synchronous>, transform_indices = @transform_6, window_bounds = array<i64: 128, 128>}, {pipeline_mode = #tpu.pipeline_mode<synchronous>, transform_indices = @transform_7, window_bounds = array<i64: 128, 128>}, {pipeline_mode = #tpu.pipeline_mode<synchronous>, transform_indices = @transform_8, window_bounds = array<i64: 1, 128>}, {transform_indices = @transform_9, window_bounds = array<i64: 8, 128>}]} {
    %c0 = arith.constant 0 : index
    %c0_0 = arith.constant 0 : index
    %0 = vector.load %arg1[%c0, %c0_0] : memref<8x128xf32, #tpu.memory_space<vmem>>, vector<8x128xf32>
    %c0_1 = arith.constant 0 : index
    %c0_2 = arith.constant 0 : index
    %1 = vector.load %arg2[%c0_1, %c0_2] : memref<8x128xf32, #tpu.memory_space<vmem>>, vector<8x128xf32>
    %c0_3 = arith.constant 0 : index
    %c0_4 = arith.constant 0 : index
    %2 = vector.load %arg3[%c0_3, %c0_4] : memref<8x128xf32, #tpu.memory_space<vmem>>, vector<8x128xf32>
    %c0_5 = arith.constant 0 : index
    %c0_6 = arith.constant 0 : index
    %3 = vector.load %arg8[%c0_5, %c0_6] : memref<128x128xf32, #tpu.memory_space<vmem>>, vector<128x128xf32>
    %cst = arith.constant dense<0.000000e+00> : vector<8x128xf32>
    %4 = tpu.matmul %1, %3, %cst {dimension_numbers = #tpu.dot_dimension_numbers<[1], [0], [0], [1], [0, 0, 1, 1], [], []>} : vector<8x128xf32>, vector<128x128xf32>, vector<8x128xf32> -> vector<8x128xf32>
    %c0_7 = arith.constant 0 : index
    %c0_8 = arith.constant 0 : index
    %5 = vector.load %arg9[%c0_7, %c0_8] : memref<1x128xf32, #tpu.memory_space<vmem>>, vector<1x128xf32>
    %6 = vector.broadcast %5 : vector<1x128xf32> to vector<8x128xf32>
    %7 = arith.addf %4, %6 : vector<8x128xf32>
    %cst_9 = arith.constant 0.000000e+00 : f32
    %8 = vector.broadcast %cst_9 : f32 to vector<8x128xf32>
    %9 = arith.minimumf %8, %7 : vector<8x128xf32>
    %10 = math.exp %9 : vector<8x128xf32>
    %11 = arith.mulf %10, %2 : vector<8x128xf32>
    %c0_10 = arith.constant 0 : index
    %c0_11 = arith.constant 0 : index
    %12 = vector.load %arg4[%c0_10, %c0_11] : memref<128x384xf32, #tpu.memory_space<vmem>>, vector<128x384xf32>
    %cst_12 = arith.constant dense<0.000000e+00> : vector<8x384xf32>
    %13 = tpu.matmul %0, %12, %cst_12 {dimension_numbers = #tpu.dot_dimension_numbers<[1], [0], [0], [1], [0, 0, 1, 1], [], []>} : vector<8x128xf32>, vector<128x384xf32>, vector<8x384xf32> -> vector<8x384xf32>
    %c0_13 = arith.constant 0 : index
    %c0_14 = arith.constant 0 : index
    %14 = vector.load %arg5[%c0_13, %c0_14] : memref<1x384xf32, #tpu.memory_space<vmem>>, vector<1x384xf32>
    %15 = vector.broadcast %14 : vector<1x384xf32> to vector<8x384xf32>
    %16 = arith.addf %13, %15 : vector<8x384xf32>
    %c0_15 = arith.constant 0 : index
    %c0_16 = arith.constant 0 : index
    %17 = vector.load %arg6[%c0_15, %c0_16] : memref<128x256xf32, #tpu.memory_space<vmem>>, vector<128x256xf32>
    %cst_17 = arith.constant dense<0.000000e+00> : vector<8x256xf32>
    %18 = tpu.matmul %11, %17, %cst_17 {dimension_numbers = #tpu.dot_dimension_numbers<[1], [0], [0], [1], [0, 0, 1, 1], [], []>} : vector<8x128xf32>, vector<128x256xf32>, vector<8x256xf32> -> vector<8x256xf32>
    %19 = vector.extract_strided_slice %16 {offsets = [0, 0], sizes = [8, 128], strides = [1, 1]} : vector<8x384xf32> to vector<8x128xf32>
    %20 = vector.extract_strided_slice %18 {offsets = [0, 0], sizes = [8, 128], strides = [1, 1]} : vector<8x256xf32> to vector<8x128xf32>
    %21 = arith.addf %19, %20 : vector<8x128xf32>
    %22 = arith.negf %21 : vector<8x128xf32>
    %23 = math.exp %22 : vector<8x128xf32>
    %cst_18 = arith.constant 1.000000e+00 : f32
    %24 = vector.broadcast %cst_18 : f32 to vector<8x128xf32>
    %25 = arith.addf %24, %23 : vector<8x128xf32>
    %26 = arith.divf %24, %25 : vector<8x128xf32>
    %27 = vector.extract_strided_slice %16 {offsets = [0, 128], sizes = [8, 128], strides = [1, 1]} : vector<8x384xf32> to vector<8x128xf32>
    %28 = vector.extract_strided_slice %18 {offsets = [0, 128], sizes = [8, 128], strides = [1, 1]} : vector<8x256xf32> to vector<8x128xf32>
    %29 = arith.addf %27, %28 : vector<8x128xf32>
    %30 = arith.negf %29 : vector<8x128xf32>
    %31 = math.exp %30 : vector<8x128xf32>
    %cst_19 = arith.constant 1.000000e+00 : f32
    %32 = vector.broadcast %cst_19 : f32 to vector<8x128xf32>
    %33 = arith.addf %32, %31 : vector<8x128xf32>
    %34 = arith.divf %32, %33 : vector<8x128xf32>
    %35 = vector.extract_strided_slice %16 {offsets = [0, 256], sizes = [8, 128], strides = [1, 1]} : vector<8x384xf32> to vector<8x128xf32>
    %36 = arith.mulf %34, %11 : vector<8x128xf32>
    %c0_20 = arith.constant 0 : index
    %c0_21 = arith.constant 0 : index
    %37 = vector.load %arg7[%c0_20, %c0_21] : memref<128x128xf32, #tpu.memory_space<vmem>>, vector<128x128xf32>
    %cst_22 = arith.constant dense<0.000000e+00> : vector<8x128xf32>
    %38 = tpu.matmul %36, %37, %cst_22 {dimension_numbers = #tpu.dot_dimension_numbers<[1], [0], [0], [1], [0, 0, 1, 1], [], []>} : vector<8x128xf32>, vector<128x128xf32>, vector<8x128xf32> -> vector<8x128xf32>
    %39 = arith.addf %35, %38 : vector<8x128xf32>
    %40 = math.tanh %39 : vector<8x128xf32>
    %41 = arith.mulf %26, %11 : vector<8x128xf32>
    %cst_23 = arith.constant 1.000000e+00 : f32
    %42 = vector.broadcast %cst_23 : f32 to vector<8x128xf32>
    %43 = arith.subf %42, %26 : vector<8x128xf32>
    %44 = arith.mulf %43, %40 : vector<8x128xf32>
    %45 = arith.addf %41, %44 : vector<8x128xf32>
    %c0_24 = arith.constant 0 : index
    %c0_25 = arith.constant 0 : index
    %46 = vector.load %arg10[%c0_24, %c0_25] : memref<8x128xf32, #tpu.memory_space<vmem>>, vector<8x128xf32>
    tpu.vector_store %arg10[%c0_24, %c0_25], %45 {strides = array<i32>} : memref<8x128xf32, #tpu.memory_space<vmem>>, vector<8x128xf32>,
    return
  }
  func.func @transform_0(%arg0: i32) -> (i32, i32) {
    %c0_i32 = arith.constant 0 : i32
    %c0_i32_0 = arith.constant 0 : i32
    return %arg0, %c0_i32 : i32, i32
  }
  func.func @transform_1(%arg0: i32) -> (i32, i32) {
    %c0_i32 = arith.constant 0 : i32
    %c0_i32_0 = arith.constant 0 : i32
    return %arg0, %c0_i32 : i32, i32
  }
  func.func @transform_2(%arg0: i32) -> (i32, i32) {
    %c0_i32 = arith.constant 0 : i32
    %c0_i32_0 = arith.constant 0 : i32
    return %arg0, %c0_i32 : i32, i32
  }
  func.func @transform_3(%arg0: i32) -> (i32, i32) {
    %c0_i32 = arith.constant 0 : i32
    %c0_i32_0 = arith.constant 0 : i32
    %c0_i32_1 = arith.constant 0 : i32
    return %c0_i32, %c0_i32_0 : i32, i32
  }
  func.func @transform_4(%arg0: i32) -> (i32, i32) {
    %c0_i32 = arith.constant 0 : i32
    %c0_i32_0 = arith.constant 0 : i32
    %c0_i32_1 = arith.constant 0 : i32
    return %c0_i32, %c0_i32_0 : i32, i32
  }
  func.func @transform_5(%arg0: i32) -> (i32, i32) {
    %c0_i32 = arith.constant 0 : i32
    %c0_i32_0 = arith.constant 0 : i32
    %c0_i32_1 = arith.constant 0 : i32
    return %c0_i32, %c0_i32_0 : i32, i32
  }
  func.func @transform_6(%arg0: i32) -> (i32, i32) {
    %c0_i32 = arith.constant 0 : i32
    %c0_i32_0 = arith.constant 0 : i32
    %c0_i32_1 = arith.constant 0 : i32
    return %c0_i32, %c0_i32_0 : i32, i32
  }
  func.func @transform_7(%arg0: i32) -> (i32, i32) {
    %c0_i32 = arith.constant 0 : i32
    %c0_i32_0 = arith.constant 0 : i32
    %c0_i32_1 = arith.constant 0 : i32
    return %c0_i32, %c0_i32_0 : i32, i32
  }
  func.func @transform_8(%arg0: i32) -> (i32, i32) {
    %c0_i32 = arith.constant 0 : i32
    %c0_i32_0 = arith.constant 0 : i32
    %c0_i32_1 = arith.constant 0 : i32
    return %c0_i32, %c0_i32_0 : i32, i32
  }
  func.func @transform_9(%arg0: i32) -> (i32, i32) {
    %c0_i32 = arith.constant 0 : i32
    %c0_i32_0 = arith.constant 0 : i32
    return %arg0, %c0_i32 : i32, i32
  }
}

</mosaic_0001>

<llo_original>
// kernel: tpu_custom_call.1
$region0: #{tpu_custom_call.1}
  #allocation0 [shape = 'u32[]', space=smem, size = 0x4, offset = 0x4, fixed_abs, tag = 'smem constant byte address 0x4 - core index']
  #allocation1 [shape = 'u32[72,128]{1,0:T(1,128)}', space=vmem, size = 0x9000, scoped, tag = 'internal scratch']
  %s0 = inlined_call_operand.hbm [shape: f32[8,128], index: 0, kind: input, shape index: {}]
  %s1 = inlined_call_operand.hbm [shape: f32[8,128], index: 1, kind: input, shape index: {}]
  %s2 = inlined_call_operand.hbm [shape: f32[8,128], index: 2, kind: input, shape index: {}]
  %s3 = inlined_call_operand.hbm [shape: f32[128,384], index: 3, kind: input, shape index: {}]
  %s4 = inlined_call_operand.vmem [shape: f32[1,384], index: 4, kind: input, shape index: {}]
  %s5 = inlined_call_operand.hbm [shape: f32[128,256], index: 5, kind: input, shape index: {}]
  %s6 = inlined_call_operand.hbm [shape: f32[128,128], index: 6, kind: input, shape index: {}]
  %s7 = inlined_call_operand.hbm [shape: f32[128,128], index: 7, kind: input, shape index: {}]
  %s8 = inlined_call_operand.vmem [shape: f32[1,128], index: 8, kind: input, shape index: {}]
  %s9 = inlined_call_operand.hbm [shape: f32[8,128], index: 9, kind: output, shape index: {}]
  %s10 = sld [smem:[#allocation0]]
  $region74: #{tpu_custom_call.1} parent=0
    _
  %s12 = ssub.s32 1, %s10
  %s13 = scalar_select 0, %s12, %s10
  $region1: #{tpu_custom_call.1} parent=0
    #allocation2 [shape = 'u8[4096]{0}', space=vmem, size = 0x1000, scoped, tag = 'input window, operand 0, single buffered']
    #allocation3 [shape = 's32[1]{0}', space=sflag, size = 0x4, scoped, tag = 'scoped memory for tpu_custom_call.1']
    #allocation4 [shape = 's32[1]{0}', space=sflag, size = 0x4, scoped, tag = 'scoped memory for tpu_custom_call.1']
    #allocation5 [shape = 'u8[4096]{0}', space=vmem, size = 0x1000, scoped, tag = 'input window, operand 1, single buffered']
    #allocation6 [shape = 's32[1]{0}', space=sflag, size = 0x4, scoped, tag = 'scoped memory for tpu_custom_call.1']
    #allocation7 [shape = 'u8[4096]{0}', space=vmem, size = 0x1000, scoped, tag = 'input window, operand 2, single buffered']
    #allocation8 [shape = 'u8[196608]{0}', space=vmem, size = 0x30000, scoped, tag = 'input window, operand 3, single buffered']
    #allocation9 [shape = 's32[1]{0}', space=sflag, size = 0x4, scoped, tag = 'scoped memory for tpu_custom_call.1']
    #allocation10 [shape = 'u8[131072]{0}', space=vmem, size = 0x20000, scoped, tag = 'input window, operand 5, single buffered']
    #allocation11 [shape = 'u8[65536]{0}', space=vmem, size = 0x10000, scoped, tag = 'input window, operand 6, single buffered']
    #allocation12 [shape = 's32[1]{0}', space=sflag, size = 0x4, scoped, tag = 'scoped memory for tpu_custom_call.1']
    #allocation13 [shape = 'u8[65536]{0}', space=vmem, size = 0x10000, scoped, tag = 'input window, operand 7, single buffered']
    #allocation14 [shape = 'u8[4096]{0}', space=vmem, size = 0x1000, scoped, tag = 'output window, operand 0, single buffered']
    %14 = vsyncpa [#allocation3], 0
    %15 = vsyncpa [#allocation6], 0
    %16 = vsyncpa [#allocation9], 0
    %17 = vsyncpa [#allocation12], 0
    %18 = vsyncpa [#allocation4], 0
    // Predicated region
    $region2: #{tpu_custom_call.1} parent=1 // pred_check
      _
    $region3: #{tpu_custom_call.1} parent=1 // pred_check_branch
      %20 = sbr.rel (0) target = $region5
    $region4: #{tpu_custom_call.1} parent=1 // pred_region
      %22 = vsyncadd [#allocation3], 0
      %s24 = sshll.u32 %s0, 4
      %s25 = int_to_ptr.hbm [resolvable:$true] %s24
      %s26 = sshll.u32 [#allocation2], 4
      %s27 = int_to_ptr.vmem [resolvable:$true] %s26
      %29 = dma.hbm_to_vmem [thread:$0]  %s25, 128, %s27, [#allocation3]
    $region5: #{tpu_custom_call.1} parent=1 // pred_fallthru
      _
    // Predicated region
    $region6: #{tpu_custom_call.1} parent=1 // pred_check
      _
    $region7: #{tpu_custom_call.1} parent=1 // pred_check_branch
      %31 = sbr.rel (0) target = $region9
    $region8: #{tpu_custom_call.1} parent=1 // pred_region
      %33 = vsyncadd [#allocation6], 0
      %s35 = sshll.u32 %s1, 4
      %s36 = int_to_ptr.hbm [resolvable:$true] %s35
      %s37 = sshll.u32 [#allocation5], 4
      %s38 = int_to_ptr.vmem [resolvable:$true] %s37
      %40 = dma.hbm_to_vmem [thread:$0]  %s36, 128, %s38, [#allocation6]
    $region9: #{tpu_custom_call.1} parent=1 // pred_fallthru
      _
    // Predicated region
    $region10: #{tpu_custom_call.1} parent=1 // pred_check
      _
    $region11: #{tpu_custom_call.1} parent=1 // pred_check_branch
      %42 = sbr.rel (0) target = $region13
    $region12: #{tpu_custom_call.1} parent=1 // pred_region
      %44 = vsyncadd [#allocation6], 0
      %s46 = sshll.u32 %s2, 4
      %s47 = int_to_ptr.hbm [resolvable:$true] %s46
      %s48 = sshll.u32 [#allocation7], 4
      %s49 = int_to_ptr.vmem [resolvable:$true] %s48
      %51 = dma.hbm_to_vmem [thread:$0]  %s47, 128, %s49, [#allocation6]
    $region13: #{tpu_custom_call.1} parent=1 // pred_fallthru
      _
    // Predicated region
    $region14: #{tpu_custom_call.1} parent=1 // pred_check
      _
    $region15: #{tpu_custom_call.1} parent=1 // pred_check_branch
      %53 = sbr.rel (0) target = $region17
    $region16: #{tpu_custom_call.1} parent=1 // pred_region
      %55 = vsyncadd [#allocation9], 0
      %s56 = sshll.u32 %s3, 4
      %s57 = int_to_ptr.hbm [resolvable:$true] %s56
      %s58 = sshll.u32 [#allocation8], 4
      %s59 = int_to_ptr.vmem [resolvable:$true] %s58
      %64 = dma.hbm_to_vmem [thread:$0]  %s57, 6144, %s59, [#allocation9], 384, 384, 24
    $region17: #{tpu_custom_call.1} parent=1 // pred_fallthru
      _
    // Predicated region
    $region18: #{tpu_custom_call.1} parent=1 // pred_check
      _
    $region19: #{tpu_custom_call.1} parent=1 // pred_check_branch
      %66 = sbr.rel (0) target = $region21
    $region20: #{tpu_custom_call.1} parent=1 // pred_region
      _
    $region21: #{tpu_custom_call.1} parent=1 // pred_fallthru
      _
    // Predicated region
    $region22: #{tpu_custom_call.1} parent=1 // pred_check
      _
    $region23: #{tpu_custom_call.1} parent=1 // pred_check_branch
      %68 = sbr.rel (0) target = $region25
    $region24: #{tpu_custom_call.1} parent=1 // pred_region
      %70 = vsyncadd [#allocation9], 0
      %s71 = sshll.u32 %s5, 4
      %s72 = int_to_ptr.hbm [resolvable:$true] %s71
      %s73 = sshll.u32 [#allocation10], 4
      %s74 = int_to_ptr.vmem [resolvable:$true] %s73
      %79 = dma.hbm_to_vmem [thread:$0]  %s72, 4096, %s74, [#allocation9], 256, 256, 16
    $region25: #{tpu_custom_call.1} parent=1 // pred_fallthru
      _
    // Predicated region
    $region26: #{tpu_custom_call.1} parent=1 // pred_check
      _
    $region27: #{tpu_custom_call.1} parent=1 // pred_check_branch
      %81 = sbr.rel (0) target = $region29
    $region28: #{tpu_custom_call.1} parent=1 // pred_region
      %83 = vsyncadd [#allocation12], 0
      %s84 = sshll.u32 %s6, 4
      %s85 = int_to_ptr.hbm [resolvable:$true] %s84
      %s86 = sshll.u32 [#allocation11], 4
      %s87 = int_to_ptr.vmem [resolvable:$true] %s86
      %92 = dma.hbm_to_vmem [thread:$0]  %s85, 2048, %s87, [#allocation12], 128, 128, 8
    $region29: #{tpu_custom_call.1} parent=1 // pred_fallthru
      _
    // Predicated region
    $region30: #{tpu_custom_call.1} parent=1 // pred_check
      _
    $region31: #{tpu_custom_call.1} parent=1 // pred_check_branch
      %94 = sbr.rel (0) target = $region33
    $region32: #{tpu_custom_call.1} parent=1 // pred_region
      %96 = vsyncadd [#allocation12], 0
      %s97 = sshll.u32 %s7, 4
      %s98 = int_to_ptr.hbm [resolvable:$true] %s97
      %s99 = sshll.u32 [#allocation13], 4
      %s100 = int_to_ptr.vmem [resolvable:$true] %s99
      %105 = dma.hbm_to_vmem [thread:$0]  %s98, 2048, %s100, [#allocation12], 128, 128, 8
    $region33: #{tpu_custom_call.1} parent=1 // pred_fallthru
      _
    // Predicated region
    $region34: #{tpu_custom_call.1} parent=1 // pred_check
      _
    $region35: #{tpu_custom_call.1} parent=1 // pred_check_branch
      %107 = sbr.rel (0) target = $region37
    $region36: #{tpu_custom_call.1} parent=1 // pred_region
      _
    $region37: #{tpu_custom_call.1} parent=1 // pred_fallthru
      _
    // Predicated region
    $region38: #{tpu_custom_call.1} parent=1 // pred_check
      _
    $region39: #{tpu_custom_call.1} parent=1 // pred_check_branch
      %109 = sbr.rel (0) target = $region41
    $region40: #{tpu_custom_call.1} parent=1 // pred_region
      %111 = dma.done [#allocation3], 128
    $region41: #{tpu_custom_call.1} parent=1 // pred_fallthru
      _
    // Predicated region
    $region42: #{tpu_custom_call.1} parent=1 // pred_check
      _
    $region43: #{tpu_custom_call.1} parent=1 // pred_check_branch
      %113 = sbr.rel (0) target = $region45
    $region44: #{tpu_custom_call.1} parent=1 // pred_region
      %115 = dma.done [#allocation6], 128
    $region45: #{tpu_custom_call.1} parent=1 // pred_fallthru
      _
    // Predicated region
    $region46: #{tpu_custom_call.1} parent=1 // pred_check
      _
    $region47: #{tpu_custom_call.1} parent=1 // pred_check_branch
      %117 = sbr.rel (0) target = $region49
    $region48: #{tpu_custom_call.1} parent=1 // pred_region
      %119 = dma.done [#allocation6], 128
    $region49: #{tpu_custom_call.1} parent=1 // pred_fallthru
      _
    // Predicated region
    $region50: #{tpu_custom_call.1} parent=1 // pred_check
      _
    $region51: #{tpu_custom_call.1} parent=1 // pred_check_branch
      %121 = sbr.rel (0) target = $region53
    $region52: #{tpu_custom_call.1} parent=1 // pred_region
      %123 = dma.done [#allocation9], 6144
    $region53: #{tpu_custom_call.1} parent=1 // pred_fallthru
      _
    // Predicated region
    $region54: #{tpu_custom_call.1} parent=1 // pred_check
      _
    $region55: #{tpu_custom_call.1} parent=1 // pred_check_branch
      %125 = sbr.rel (0) target = $region57
    $region56: #{tpu_custom_call.1} parent=1 // pred_region
      %127 = dma.done [#allocation9], 4096
    $region57: #{tpu_custom_call.1} parent=1 // pred_fallthru
      _
    // Predicated region
    $region58: #{tpu_custom_call.1} parent=1 // pred_check
      _
    $region59: #{tpu_custom_call.1} parent=1 // pred_check_branch
      %129 = sbr.rel (0) target = $region61
    $region60: #{tpu_custom_call.1} parent=1 // pred_region
      %131 = dma.done [#allocation12], 2048
    $region61: #{tpu_custom_call.1} parent=1 // pred_fallthru
      _
    // Predicated region
    $region62: #{tpu_custom_call.1} parent=1 // pred_check
      _
    $region63: #{tpu_custom_call.1} parent=1 // pred_check_branch
      %133 = sbr.rel (0) target = $region65
    $region64: #{tpu_custom_call.1} parent=1 // pred_region
      %135 = dma.done [#allocation12], 2048
    $region65: #{tpu_custom_call.1} parent=1 // pred_fallthru
      _
    %v136 = vld [vmem:[#allocation2] sm:$0xff]
    %v137 = vld [vmem:[#allocation5] sm:$0xff]
    %v138 = vld [vmem:[#allocation7] sm:$0xff]
    %v139 = vld [vmem:[#allocation13] sm:$0xff]
    %v140 = vld [vmem:[#allocation13 + $0x8] sm:$0xff]
    %v141 = vld [vmem:[#allocation13 + $0x10] sm:$0xff]
    %v142 = vld [vmem:[#allocation13 + $0x18] sm:$0xff]
    %v143 = vld [vmem:[#allocation13 + $0x20] sm:$0xff]
    %v144 = vld [vmem:[#allocation13 + $0x28] sm:$0xff]
    %v145 = vld [vmem:[#allocation13 + $0x30] sm:$0xff]
    %v146 = vld [vmem:[#allocation13 + $0x38] sm:$0xff]
    %v147 = vld [vmem:[#allocation13 + $0x40] sm:$0xff]
    %v148 = vld [vmem:[#allocation13 + $0x48] sm:$0xff]
    %v149 = vld [vmem:[#allocation13 + $0x50] sm:$0xff]
    %v150 = vld [vmem:[#allocation13 + $0x58] sm:$0xff]
    %v151 = vld [vmem:[#allocation13 + $0x60] sm:$0xff]
    %v152 = vld [vmem:[#allocation13 + $0x68] sm:$0xff]
    %v153 = vld [vmem:[#allocation13 + $0x70] sm:$0xff]
    %v154 = vld [vmem:[#allocation13 + $0x78] sm:$0xff]
    %v155 = vld [vmem:[%s8] sm:$0x1]
    %v157 = vperm.slane %v155, 0
    %159 = vmatpush.msra.mxu0 %v154
    %160 = vmatpush.msra.mxu0 %v153
    %161 = vmatpush.msra.mxu0 %v152
    %162 = vmatpush.msra.mxu0 %v151
    %163 = vmatpush.msra.mxu0 %v150
    %164 = vmatpush.msra.mxu0 %v149
    %165 = vmatpush.msra.mxu0 %v148
    %166 = vmatpush.msra.mxu0 %v147
    %167 = vmatpush.msra.mxu0 %v146
    %168 = vmatpush.msra.mxu0 %v145
    %169 = vmatpush.msra.mxu0 %v144
    %170 = vmatpush.msra.mxu0 %v143
    %171 = vmatpush.msra.mxu0 %v142
    %172 = vmatpush.msra.mxu0 %v141
    %173 = vmatpush.msra.mxu0 %v140
    %174 = vmatpush.msra.mxu0 %v139
    %175 = vmatmul.f32.gmra.mxu0 %v137
    %v176 = vpop.f32.mrf.mxu0
    %v177 = vadd.f32 %v157, %v176
    %178 = vdwg.mxu0
    %v179 = vmin.f32 %v177, 0.0
    %v180 = vmul.f32 %v179, 1.442695
    %v181 = vpow.pop %v180
    %v182 = vmul.f32 %v181, %v138
    %v183 = vld [vmem:[#allocation8] sm:$0xff]
    %v184 = vld [vmem:[#allocation8 + $0x8] sm:$0xff]
    %v185 = vld [vmem:[#allocation8 + $0x10] sm:$0xff]
    %v186 = vld [vmem:[#allocation8 + $0x18] sm:$0xff]
    %v187 = vld [vmem:[#allocation8 + $0x20] sm:$0xff]
    %v188 = vld [vmem:[#allocation8 + $0x28] sm:$0xff]
    %v189 = vld [vmem:[#allocation8 + $0x30] sm:$0xff]
    %v190 = vld [vmem:[#allocation8 + $0x38] sm:$0xff]
    %v191 = vld [vmem:[#allocation8 + $0x40] sm:$0xff]
    %v192 = vld [vmem:[#allocation8 + $0x48] sm:$0xff]
    %v193 = vld [vmem:[#allocation8 + $0x50] sm:$0xff]
    %v194 = vld [vmem:[#allocation8 + $0x58] sm:$0xff]
    %v195 = vld [vmem:[#allocation8 + $0x60] sm:$0xff]
    %v196 = vld [vmem:[#allocation8 + $0x68] sm:$0xff]
    %v197 = vld [vmem:[#allocation8 + $0x70] sm:$0xff]
    %v198 = vld [vmem:[#allocation8 + $0x78] sm:$0xff]
    %v199 = vld [vmem:[#allocation8 + $0x80] sm:$0xff]
    %v200 = vld [vmem:[#allocation8 + $0x88] sm:$0xff]
    %v201 = vld [vmem:[#allocation8 + $0x90] sm:$0xff]
    %v202 = vld [vmem:[#allocation8 + $0x98] sm:$0xff]
    %v203 = vld [vmem:[#allocation8 + $0xa0] sm:$0xff]
    %v204 = vld [vmem:[#allocation8 + $0xa8] sm:$0xff]
    %v205 = vld [vmem:[#allocation8 + $0xb0] sm:$0xff]
    %v206 = vld [vmem:[#allocation8 + $0xb8] sm:$0xff]
    %v207 = vld [vmem:[#allocation8 + $0xc0] sm:$0xff]
    %v208 = vld [vmem:[#allocation8 + $0xc8] sm:$0xff]
    %v209 = vld [vmem:[#allocation8 + $0xd0] sm:$0xff]
    %v210 = vld [vmem:[#allocation8 + $0xd8] sm:$0xff]
    %v211 = vld [vmem:[#allocation8 + $0xe0] sm:$0xff]
    %v212 = vld [vmem:[#allocation8 + $0xe8] sm:$0xff]
    %v213 = vld [vmem:[#allocation8 + $0xf0] sm:$0xff]
    %v214 = vld [vmem:[#allocation8 + $0xf8] sm:$0xff]
    %v215 = vld [vmem:[#allocation8 + $0x100] sm:$0xff]
    %v216 = vld [vmem:[#allocation8 + $0x108] sm:$0xff]
    %v217 = vld [vmem:[#allocation8 + $0x110] sm:$0xff]
    %v218 = vld [vmem:[#allocation8 + $0x118] sm:$0xff]
    %v219 = vld [vmem:[#allocation8 + $0x120] sm:$0xff]
    %v220 = vld [vmem:[#allocation8 + $0x128] sm:$0xff]
    %v221 = vld [vmem:[#allocation8 + $0x130] sm:$0xff]
    %v222 = vld [vmem:[#allocation8 + $0x138] sm:$0xff]
    %v223 = vld [vmem:[#allocation8 + $0x140] sm:$0xff]
    %v224 = vld [vmem:[#allocation8 + $0x148] sm:$0xff]
    %v225 = vld [vmem:[#allocation8 + $0x150] sm:$0xff]
    %v226 = vld [vmem:[#allocation8 + $0x158] sm:$0xff]
    %v227 = vld [vmem:[#allocation8 + $0x160] sm:$0xff]
    %v228 = vld [vmem:[#allocation8 + $0x168] sm:$0xff]
    %v229 = vld [vmem:[#allocation8 + $0x170] sm:$0xff]
    %v230 = vld [vmem:[#allocation8 + $0x178] sm:$0xff]
    %v231 = vld [vmem:[%s4] sm:$0x7]
    %v233 = vperm.slane %v231, 0
    %v234 = vperm.slane %v231, 1
    %v235 = vperm.slane %v231, 2
    %239 = vmatpush.msra.mxu0 %v228
    %240 = vmatpush.msra.mxu0 %v225
    %241 = vmatpush.msra.mxu0 %v222
    %242 = vmatpush.msra.mxu0 %v219
    %243 = vmatpush.msra.mxu0 %v216
    %244 = vmatpush.msra.mxu0 %v213
    %245 = vmatpush.msra.mxu0 %v210
    %246 = vmatpush.msra.mxu0 %v207
    %247 = vmatpush.msra.mxu0 %v204
    %248 = vmatpush.msra.mxu0 %v201
    %249 = vmatpush.msra.mxu0 %v198
    %250 = vmatpush.msra.mxu0 %v195
    %251 = vmatpush.msra.mxu0 %v192
    %252 = vmatpush.msra.mxu0 %v189
    %253 = vmatpush.msra.mxu0 %v186
    %254 = vmatpush.msra.mxu0 %v183
    %255 = vmatmul.f32.gmra.mxu0 %v136
    %v256 = vpop.f32.mrf.mxu0
    %v257 = vadd.f32 %v233, %v256
    %258 = vdwg.mxu0
    %259 = vmatpush.msra.mxu0 %v229
    %260 = vmatpush.msra.mxu0 %v226
    %261 = vmatpush.msra.mxu0 %v223
    %262 = vmatpush.msra.mxu0 %v220
    %263 = vmatpush.msra.mxu0 %v217
    %264 = vmatpush.msra.mxu0 %v214
    %265 = vmatpush.msra.mxu0 %v211
    %266 = vmatpush.msra.mxu0 %v208
    %267 = vmatpush.msra.mxu0 %v205
    %268 = vmatpush.msra.mxu0 %v202
    %269 = vmatpush.msra.mxu0 %v199
    %270 = vmatpush.msra.mxu0 %v196
    %271 = vmatpush.msra.mxu0 %v193
    %272 = vmatpush.msra.mxu0 %v190
    %273 = vmatpush.msra.mxu0 %v187
    %274 = vmatpush.msra.mxu0 %v184
    %275 = vmatmul.f32.gmra.mxu0 %v136
    %v276 = vpop.f32.mrf.mxu0
    %v277 = vadd.f32 %v234, %v276
    %278 = vdwg.mxu0
    %279 = vmatpush.msra.mxu0 %v230
    %280 = vmatpush.msra.mxu0 %v227
    %281 = vmatpush.msra.mxu0 %v224
    %282 = vmatpush.msra.mxu0 %v221
    %283 = vmatpush.msra.mxu0 %v218
    %284 = vmatpush.msra.mxu0 %v215
    %285 = vmatpush.msra.mxu0 %v212
    %286 = vmatpush.msra.mxu0 %v209
    %287 = vmatpush.msra.mxu0 %v206
    %288 = vmatpush.msra.mxu0 %v203
    %289 = vmatpush.msra.mxu0 %v200
    %290 = vmatpush.msra.mxu0 %v197
    %291 = vmatpush.msra.mxu0 %v194
    %292 = vmatpush.msra.mxu0 %v191
    %293 = vmatpush.msra.mxu0 %v188
    %294 = vmatpush.msra.mxu0 %v185
    %295 = vmatmul.f32.gmra.mxu0 %v136
    %v296 = vpop.f32.mrf.mxu0
    %v297 = vadd.f32 %v235, %v296
    %298 = vdwg.mxu0
    %v299 = vld [vmem:[#allocation10] sm:$0xff]
    %v300 = vld [vmem:[#allocation10 + $0x8] sm:$0xff]
    %v301 = vld [vmem:[#allocation10 + $0x10] sm:$0xff]
    %v302 = vld [vmem:[#allocation10 + $0x18] sm:$0xff]
    %v303 = vld [vmem:[#allocation10 + $0x20] sm:$0xff]
    %v304 = vld [vmem:[#allocation10 + $0x28] sm:$0xff]
    %v305 = vld [vmem:[#allocation10 + $0x30] sm:$0xff]
    %v306 = vld [vmem:[#allocation10 + $0x38] sm:$0xff]
    %v307 = vld [vmem:[#allocation10 + $0x40] sm:$0xff]
    %v308 = vld [vmem:[#allocation10 + $0x48] sm:$0xff]
    %v309 = vld [vmem:[#allocation10 + $0x50] sm:$0xff]
    %v310 = vld [vmem:[#allocation10 + $0x58] sm:$0xff]
    %v311 = vld [vmem:[#allocation10 + $0x60] sm:$0xff]
    %v312 = vld [vmem:[#allocation10 + $0x68] sm:$0xff]
    %v313 = vld [vmem:[#allocation10 + $0x70] sm:$0xff]
    %v314 = vld [vmem:[#allocation10 + $0x78] sm:$0xff]
    %v315 = vld [vmem:[#allocation10 + $0x80] sm:$0xff]
    %v316 = vld [vmem:[#allocation10 + $0x88] sm:$0xff]
    %v317 = vld [vmem:[#allocation10 + $0x90] sm:$0xff]
    %v318 = vld [vmem:[#allocation10 + $0x98] sm:$0xff]
    %v319 = vld [vmem:[#allocation10 + $0xa0] sm:$0xff]
    %v320 = vld [vmem:[#allocation10 + $0xa8] sm:$0xff]
    %v321 = vld [vmem:[#allocation10 + $0xb0] sm:$0xff]
    %v322 = vld [vmem:[#allocation10 + $0xb8] sm:$0xff]
    %v323 = vld [vmem:[#allocation10 + $0xc0] sm:$0xff]
    %v324 = vld [vmem:[#allocation10 + $0xc8] sm:$0xff]
    %v325 = vld [vmem:[#allocation10 + $0xd0] sm:$0xff]
    %v326 = vld [vmem:[#allocation10 + $0xd8] sm:$0xff]
    %v327 = vld [vmem:[#allocation10 + $0xe0] sm:$0xff]
    %v328 = vld [vmem:[#allocation10 + $0xe8] sm:$0xff]
    %v329 = vld [vmem:[#allocation10 + $0xf0] sm:$0xff]
    %v330 = vld [vmem:[#allocation10 + $0xf8] sm:$0xff]
    %331 = vmatpush.msra.mxu0 %v329
    %332 = vmatpush.msra.mxu0 %v327
    %333 = vmatpush.msra.mxu0 %v325
    %334 = vmatpush.msra.mxu0 %v323
    %335 = vmatpush.msra.mxu0 %v321
    %336 = vmatpush.msra.mxu0 %v319
    %337 = vmatpush.msra.mxu0 %v317
    %338 = vmatpush.msra.mxu0 %v315
    %339 = vmatpush.msra.mxu0 %v313
    %340 = vmatpush.msra.mxu0 %v311
    %341 = vmatpush.msra.mxu0 %v309
    %342 = vmatpush.msra.mxu0 %v307
    %343 = vmatpush.msra.mxu0 %v305
    %344 = vmatpush.msra.mxu0 %v303
    %345 = vmatpush.msra.mxu0 %v301
    %346 = vmatpush.msra.mxu0 %v299
    %347 = vmatmul.f32.gmra.mxu0 %v182
    %v348 = vpop.f32.mrf.mxu0
    %v349 = vadd.f32 0.0, %v348
    %350 = vdwg.mxu0
    %351 = vmatpush.msra.mxu0 %v330
    %352 = vmatpush.msra.mxu0 %v328
    %353 = vmatpush.msra.mxu0 %v326
    %354 = vmatpush.msra.mxu0 %v324
    %355 = vmatpush.msra.mxu0 %v322
    %356 = vmatpush.msra.mxu0 %v320
    %357 = vmatpush.msra.mxu0 %v318
    %358 = vmatpush.msra.mxu0 %v316
    %359 = vmatpush.msra.mxu0 %v314
    %360 = vmatpush.msra.mxu0 %v312
    %361 = vmatpush.msra.mxu0 %v310
    %362 = vmatpush.msra.mxu0 %v308
    %363 = vmatpush.msra.mxu0 %v306
    %364 = vmatpush.msra.mxu0 %v304
    %365 = vmatpush.msra.mxu0 %v302
    %366 = vmatpush.msra.mxu0 %v300
    %367 = vmatmul.f32.gmra.mxu0 %v182
    %v368 = vpop.f32.mrf.mxu0
    %v369 = vadd.f32 0.0, %v368
    %370 = vdwg.mxu0
    %v371 = vadd.f32 %v257, %v349
    %v372 = vxor.u32 %v371, 2147483648
    %v373 = vmul.f32 %v372, 1.442695
    %v374 = vpow.pop %v373
    %v375 = vadd.f32 %v374, 1.0
    %v376 = vrcp.pop %v375
    %v377 = vmul.f32 %v375, %v376
    %v378 = vsub.f32 1.0, %v377
    %v379 = vmul.f32 %v376, %v378
    %v380 = vadd.f32 %v376, %v379
    %vm381 = vweird.f32 %v375
    %vm382 = vweird.f32 %v376
    %vm383 = vmor %vm381, %vm382
    %v384 = vsel %vm383, %v376, %v380
    %v385 = vand.u32 2147483647, %v375
    %vm386 = vcmp.eq.f32.partialorder %v385, 8.507059e+37
    %v387 = vand.u32 %v375, 2147483648
    %v388 = vor.u32 1.1754944e-38, %v387
    %v389 = vsel %vm386, %v388, %v384
    %v390 = vmul.f32 1.0, %v389
    %v391 = vadd.f32 %v277, %v369
    %v392 = vxor.u32 %v391, 2147483648
    %v393 = vmul.f32 %v392, 1.442695
    %v394 = vpow.pop %v393
    %v395 = vadd.f32 %v394, 1.0
    %v396 = vrcp.pop %v395
    %v397 = vmul.f32 %v395, %v396
    %v398 = vsub.f32 1.0, %v397
    %v399 = vmul.f32 %v396, %v398
    %v400 = vadd.f32 %v396, %v399
    %vm401 = vweird.f32 %v395
    %vm402 = vweird.f32 %v396
    %vm403 = vmor %vm401, %vm402
    %v404 = vsel %vm403, %v396, %v400
    %v405 = vand.u32 2147483647, %v395
    %vm406 = vcmp.eq.f32.partialorder %v405, 8.507059e+37
    %v407 = vand.u32 %v395, 2147483648
    %v408 = vor.u32 1.1754944e-38, %v407
    %v409 = vsel %vm406, %v408, %v404
    %v410 = vmul.f32 1.0, %v409
    %v411 = vmul.f32 %v410, %v182
    %v412 = vld [vmem:[#allocation11] sm:$0xff]
    %v413 = vld [vmem:[#allocation11 + $0x8] sm:$0xff]
    %v414 = vld [vmem:[#allocation11 + $0x10] sm:$0xff]
    %v415 = vld [vmem:[#allocation11 + $0x18] sm:$0xff]
    %v416 = vld [vmem:[#allocation11 + $0x20] sm:$0xff]
    %v417 = vld [vmem:[#allocation11 + $0x28] sm:$0xff]
    %v418 = vld [vmem:[#allocation11 + $0x30] sm:$0xff]
    %v419 = vld [vmem:[#allocation11 + $0x38] sm:$0xff]
    %v420 = vld [vmem:[#allocation11 + $0x40] sm:$0xff]
    %v421 = vld [vmem:[#allocation11 + $0x48] sm:$0xff]
    %v422 = vld [vmem:[#allocation11 + $0x50] sm:$0xff]
    %v423 = vld [vmem:[#allocation11 + $0x58] sm:$0xff]
    %v424 = vld [vmem:[#allocation11 + $0x60] sm:$0xff]
    %v425 = vld [vmem:[#allocation11 + $0x68] sm:$0xff]
    %v426 = vld [vmem:[#allocation11 + $0x70] sm:$0xff]
    %v427 = vld [vmem:[#allocation11 + $0x78] sm:$0xff]
    %428 = vmatpush.msra.mxu0 %v427
    %429 = vmatpush.msra.mxu0 %v426
    %430 = vmatpush.msra.mxu0 %v425
    %431 = vmatpush.msra.mxu0 %v424
    %432 = vmatpush.msra.mxu0 %v423
    %433 = vmatpush.msra.mxu0 %v422
    %434 = vmatpush.msra.mxu0 %v421
    %435 = vmatpush.msra.mxu0 %v420
    %436 = vmatpush.msra.mxu0 %v419
    %437 = vmatpush.msra.mxu0 %v418
    %438 = vmatpush.msra.mxu0 %v417
    %439 = vmatpush.msra.mxu0 %v416
    %440 = vmatpush.msra.mxu0 %v415
    %441 = vmatpush.msra.mxu0 %v414
    %442 = vmatpush.msra.mxu0 %v413
    %443 = vmatpush.msra.mxu0 %v412
    %444 = vmatmul.f32.gmra.mxu0 %v411
    %v445 = vpop.f32.mrf.mxu0
    %v446 = vadd.f32 0.0, %v445
    %447 = vdwg.mxu0
    %v448 = vadd.f32 %v297, %v446
    %v449 = vtanh.pop %v448
    %v450 = vmul.f32 %v390, %v182
    %v451 = vsub.f32 1.0, %v390
    %v452 = vmul.f32 %v451, %v449
    %v453 = vadd.f32 %v450, %v452
    %454 = vst [vmem:[#allocation14] sm:$0xff] %v453
    // Predicated region
    $region66: #{tpu_custom_call.1} parent=1 // pred_check
      _
    $region67: #{tpu_custom_call.1} parent=1 // pred_check_branch
      %456 = sbr.rel (0) target = $region69
    $region68: #{tpu_custom_call.1} parent=1 // pred_region
      %458 = vsyncadd [#allocation4], 0
      %s460 = sshll.u32 [#allocation14], 4
      %s461 = int_to_ptr.vmem [resolvable:$true] %s460
      %s462 = sshll.u32 %s9, 4
      %s463 = int_to_ptr.hbm [resolvable:$true] %s462
      %465 = dma.vmem_to_hbm [thread:$0]  %s461, 128, %s463, [#allocation4]
    $region69: #{tpu_custom_call.1} parent=1 // pred_fallthru
      _
    // Predicated region
    $region70: #{tpu_custom_call.1} parent=1 // pred_check
      _
    $region71: #{tpu_custom_call.1} parent=1 // pred_check_branch
      %467 = sbr.rel (0) target = $region73
    $region72: #{tpu_custom_call.1} parent=1 // pred_region
      %469 = dma.done [#allocation4], 128
    $region73: #{tpu_custom_call.1} parent=1 // pred_fallthru
      _
    %470 = vsyncpa [#allocation3], 1
    %471 = vsyncpa [#allocation6], 1
    %472 = vsyncpa [#allocation9], 1
    %473 = vsyncpa [#allocation12], 1
    %474 = vsyncpa [#allocation4], 1

// kernel: tpu_custom_call.1
$region0: #{tpu_custom_call.1}
  #allocation0 [shape = 'u32[]', space=smem, size = 0x4, offset = 0x4, fixed_abs, tag = 'smem constant byte address 0x4 - core index']
  #allocation1 [shape = 'u32[72,128]{1,0:T(1,128)}', space=vmem, size = 0x9000, scoped, tag = 'internal scratch']
  %s0 = inlined_call_operand.hbm [shape: f32[8,128], index: 0, kind: input, shape index: {}]
  %s1 = inlined_call_operand.hbm [shape: f32[8,128], index: 1, kind: input, shape index: {}]
  %s2 = inlined_call_operand.hbm [shape: f32[8,128], index: 2, kind: input, shape index: {}]
  %s3 = inlined_call_operand.hbm [shape: f32[128,384], index: 3, kind: input, shape index: {}]
  %s4 = inlined_call_operand.vmem [shape: f32[1,384], index: 4, kind: input, shape index: {}]
  %s5 = inlined_call_operand.hbm [shape: f32[128,256], index: 5, kind: input, shape index: {}]
  %s6 = inlined_call_operand.hbm [shape: f32[128,128], index: 6, kind: input, shape index: {}]
  %s7 = inlined_call_operand.hbm [shape: f32[128,128], index: 7, kind: input, shape index: {}]
  %s8 = inlined_call_operand.vmem [shape: f32[1,128], index: 8, kind: input, shape index: {}]
  %s9 = inlined_call_operand.hbm [shape: f32[8,128], index: 9, kind: output, shape index: {}]
  %s10 = sld [smem:[#allocation0]]
  $region74: #{tpu_custom_call.1} parent=0
    _
  %s12 = ssub.s32 1, %s10
  %s13 = scalar_select 0, %s12, %s10
  $region1: #{tpu_custom_call.1} parent=0
    #allocation2 [shape = 'u8[4096]{0}', space=vmem, size = 0x1000, scoped, tag = 'input window, operand 0, single buffered']
    #allocation3 [shape = 's32[1]{0}', space=sflag, size = 0x4, scoped, tag = 'scoped memory for tpu_custom_call.1']
    #allocation4 [shape = 's32[1]{0}', space=sflag, size = 0x4, scoped, tag = 'scoped memory for tpu_custom_call.1']
    #allocation5 [shape = 'u8[4096]{0}', space=vmem, size = 0x1000, scoped, tag = 'input window, operand 1, single buffered']
    #allocation6 [shape = 's32[1]{0}', space=sflag, size = 0x4, scoped, tag = 'scoped memory for tpu_custom_call.1']
    #allocation7 [shape = 'u8[4096]{0}', space=vmem, size = 0x1000, scoped, tag = 'input window, operand 2, single buffered']
    #allocation8 [shape = 'u8[196608]{0}', space=vmem, size = 0x30000, scoped, tag = 'input window, operand 3, single buffered']
    #allocation9 [shape = 's32[1]{0}', space=sflag, size = 0x4, scoped, tag = 'scoped memory for tpu_custom_call.1']
    #allocation10 [shape = 'u8[131072]{0}', space=vmem, size = 0x20000, scoped, tag = 'input window, operand 5, single buffered']
    #allocation11 [shape = 'u8[65536]{0}', space=vmem, size = 0x10000, scoped, tag = 'input window, operand 6, single buffered']
    #allocation12 [shape = 's32[1]{0}', space=sflag, size = 0x4, scoped, tag = 'scoped memory for tpu_custom_call.1']
    #allocation13 [shape = 'u8[65536]{0}', space=vmem, size = 0x10000, scoped, tag = 'input window, operand 7, single buffered']
    #allocation14 [shape = 'u8[4096]{0}', space=vmem, size = 0x1000, scoped, tag = 'output window, operand 0, single buffered']
    %14 = vsyncpa [#allocation3], 0
    %15 = vsyncpa [#allocation6], 0
    %16 = vsyncpa [#allocation9], 0
    %17 = vsyncpa [#allocation12], 0
    %18 = vsyncpa [#allocation4], 0
    // Predicated region
    $region2: #{tpu_custom_call.1} parent=1 // pred_check
      _
    $region3: #{tpu_custom_call.1} parent=1 // pred_check_branch
      %20 = sbr.rel (0) target = $region5
    $region4: #{tpu_custom_call.1} parent=1 // pred_region
      %22 = vsyncadd [#allocation3], 0
      %s24 = sshll.u32 %s0, 4
      %s25 = int_to_ptr.hbm [resolvable:$true] %s24
      %s26 = sshll.u32 [#allocation2], 4
      %s27 = int_to_ptr.vmem [resolvable:$true] %s26
      %29 = dma.hbm_to_vmem [thread:$0]  %s25, 128, %s27, [#allocation3]
    $region5: #{tpu_custom_call.1} parent=1 // pred_fallthru
      _
    // Predicated region
    $region6: #{tpu_custom_call.1} parent=1 // pred_check
      _
    $region7: #{tpu_custom_call.1} parent=1 // pred_check_branch
      %31 = sbr.rel (0) target = $region9
    $region8: #{tpu_custom_call.1} parent=1 // pred_region
      %33 = vsyncadd [#allocation6], 0
      %s35 = sshll.u32 %s1, 4
      %s36 = int_to_ptr.hbm [resolvable:$true] %s35
      %s37 = sshll.u32 [#allocation5], 4
      %s38 = int_to_ptr.vmem [resolvable:$true] %s37
      %40 = dma.hbm_to_vmem [thread:$0]  %s36, 128, %s38, [#allocation6]
    $region9: #{tpu_custom_call.1} parent=1 // pred_fallthru
      _
    // Predicated region
    $region10: #{tpu_custom_call.1} parent=1 // pred_check
      _
    $region11: #{tpu_custom_call.1} parent=1 // pred_check_branch
      %42 = sbr.rel (0) target = $region13
    $region12: #{tpu_custom_call.1} parent=1 // pred_region
      %44 = vsyncadd [#allocation6], 0
      %s46 = sshll.u32 %s2, 4
      %s47 = int_to_ptr.hbm [resolvable:$true] %s46
      %s48 = sshll.u32 [#allocation7], 4
      %s49 = int_to_ptr.vmem [resolvable:$true] %s48
      %51 = dma.hbm_to_vmem [thread:$0]  %s47, 128, %s49, [#allocation6]
    $region13: #{tpu_custom_call.1} parent=1 // pred_fallthru
      _
    // Predicated region
    $region14: #{tpu_custom_call.1} parent=1 // pred_check
      _
    $region15: #{tpu_custom_call.1} parent=1 // pred_check_branch
      %53 = sbr.rel (0) target = $region17
    $region16: #{tpu_custom_call.1} parent=1 // pred_region
      %55 = vsyncadd [#allocation9], 0
      %s56 = sshll.u32 %s3, 4
      %s57 = int_to_ptr.hbm [resolvable:$true] %s56
      %s58 = sshll.u32 [#allocation8], 4
      %s59 = int_to_ptr.vmem [resolvable:$true] %s58
      %64 = dma.hbm_to_vmem [thread:$0]  %s57, 6144, %s59, [#allocation9], 384, 384, 24
    $region17: #{tpu_custom_call.1} parent=1 // pred_fallthru
      _
    // Predicated region
    $region18: #{tpu_custom_call.1} parent=1 // pred_check
      _
    $region19: #{tpu_custom_call.1} parent=1 // pred_check_branch
      %66 = sbr.rel (0) target = $region21
    $region20: #{tpu_custom_call.1} parent=1 // pred_region
      _
    $region21: #{tpu_custom_call.1} parent=1 // pred_fallthru
      _
    // Predicated region
    $region22: #{tpu_custom_call.1} parent=1 // pred_check
      _
    $region23: #{tpu_custom_call.1} parent=1 // pred_check_branch
      %68 = sbr.rel (0) target = $region25
    $region24: #{tpu_custom_call.1} parent=1 // pred_region
      %70 = vsyncadd [#allocation9], 0
      %s71 = sshll.u32 %s5, 4
      %s72 = int_to_ptr.hbm [resolvable:$true] %s71
      %s73 = sshll.u32 [#allocation10], 4
      %s74 = int_to_ptr.vmem [resolvable:$true] %s73
      %79 = dma.hbm_to_vmem [thread:$0]  %s72, 4096, %s74, [#allocation9], 256, 256, 16
    $region25: #{tpu_custom_call.1} parent=1 // pred_fallthru
      _
    // Predicated region
    $region26: #{tpu_custom_call.1} parent=1 // pred_check
      _
    $region27: #{tpu_custom_call.1} parent=1 // pred_check_branch
      %81 = sbr.rel (0) target = $region29
    $region28: #{tpu_custom_call.1} parent=1 // pred_region
      %83 = vsyncadd [#allocation12], 0
      %s84 = sshll.u32 %s6, 4
      %s85 = int_to_ptr.hbm [resolvable:$true] %s84
      %s86 = sshll.u32 [#allocation11], 4
      %s87 = int_to_ptr.vmem [resolvable:$true] %s86
      %92 = dma.hbm_to_vmem [thread:$0]  %s85, 2048, %s87, [#allocation12], 128, 128, 8
    $region29: #{tpu_custom_call.1} parent=1 // pred_fallthru
      _
    // Predicated region
    $region30: #{tpu_custom_call.1} parent=1 // pred_check
      _
    $region31: #{tpu_custom_call.1} parent=1 // pred_check_branch
      %94 = sbr.rel (0) target = $region33
    $region32: #{tpu_custom_call.1} parent=1 // pred_region
      %96 = vsyncadd [#allocation12], 0
      %s97 = sshll.u32 %s7, 4
      %s98 = int_to_ptr.hbm [resolvable:$true] %s97
      %s99 = sshll.u32 [#allocation13], 4
      %s100 = int_to_ptr.vmem [resolvable:$true] %s99
      %105 = dma.hbm_to_vmem [thread:$0]  %s98, 2048, %s100, [#allocation12], 128, 128, 8
    $region33: #{tpu_custom_call.1} parent=1 // pred_fallthru
      _
    // Predicated region
    $region34: #{tpu_custom_call.1} parent=1 // pred_check
      _
    $region35: #{tpu_custom_call.1} parent=1 // pred_check_branch
      %107 = sbr.rel (0) target = $region37
    $region36: #{tpu_custom_call.1} parent=1 // pred_region
      _
    $region37: #{tpu_custom_call.1} parent=1 // pred_fallthru
      _
    // Predicated region
    $region38: #{tpu_custom_call.1} parent=1 // pred_check
      _
    $region39: #{tpu_custom_call.1} parent=1 // pred_check_branch
      %109 = sbr.rel (0) target = $region41
    $region40: #{tpu_custom_call.1} parent=1 // pred_region
      %111 = dma.done [#allocation3], 128
    $region41: #{tpu_custom_call.1} parent=1 // pred_fallthru
      _
    // Predicated region
    $region42: #{tpu_custom_call.1} parent=1 // pred_check
      _
    $region43: #{tpu_custom_call.1} parent=1 // pred_check_branch
      %113 = sbr.rel (0) target = $region45
    $region44: #{tpu_custom_call.1} parent=1 // pred_region
      %115 = dma.done [#allocation6], 128
    $region45: #{tpu_custom_call.1} parent=1 // pred_fallthru
      _
    // Predicated region
    $region46: #{tpu_custom_call.1} parent=1 // pred_check
      _
    $region47: #{tpu_custom_call.1} parent=1 // pred_check_branch
      %117 = sbr.rel (0) target = $region49
    $region48: #{tpu_custom_call.1} parent=1 // pred_region
      %119 = dma.done [#allocation6], 128
    $region49: #{tpu_custom_call.1} parent=1 // pred_fallthru
      _
    // Predicated region
    $region50: #{tpu_custom_call.1} parent=1 // pred_check
      _
    $region51: #{tpu_custom_call.1} parent=1 // pred_check_branch
      %121 = sbr.rel (0) target = $region53
    $region52: #{tpu_custom_call.1} parent=1 // pred_region
      %123 = dma.done [#allocation9], 6144
    $region53: #{tpu_custom_call.1} parent=1 // pred_fallthru
      _
    // Predicated region
    $region54: #{tpu_custom_call.1} parent=1 // pred_check
      _
    $region55: #{tpu_custom_call.1} parent=1 // pred_check_branch
      %125 = sbr.rel (0) target = $region57
    $region56: #{tpu_custom_call.1} parent=1 // pred_region
      %127 = dma.done [#allocation9], 4096
    $region57: #{tpu_custom_call.1} parent=1 // pred_fallthru
      _
    // Predicated region
    $region58: #{tpu_custom_call.1} parent=1 // pred_check
      _
    $region59: #{tpu_custom_call.1} parent=1 // pred_check_branch
      %129 = sbr.rel (0) target = $region61
    $region60: #{tpu_custom_call.1} parent=1 // pred_region
      %131 = dma.done [#allocation12], 2048
    $region61: #{tpu_custom_call.1} parent=1 // pred_fallthru
      _
    // Predicated region
    $region62: #{tpu_custom_call.1} parent=1 // pred_check
      _
    $region63: #{tpu_custom_call.1} parent=1 // pred_check_branch
      %133 = sbr.rel (0) target = $region65
    $region64: #{tpu_custom_call.1} parent=1 // pred_region
      %135 = dma.done [#allocation12], 2048
    $region65: #{tpu_custom_call.1} parent=1 // pred_fallthru
      _
    %v136 = vld [vmem:[#allocation2] sm:$0xff]
    %v137 = vld [vmem:[#allocation5] sm:$0xff]
    %v138 = vld [vmem:[#allocation7] sm:$0xff]
    %v139 = vld [vmem:[#allocation13] sm:$0xff]
    %v140 = vld [vmem:[#allocation13 + $0x8] sm:$0xff]
    %v141 = vld [vmem:[#allocation13 + $0x10] sm:$0xff]
    %v142 = vld [vmem:[#allocation13 + $0x18] sm:$0xff]
    %v143 = vld [vmem:[#allocation13 + $0x20] sm:$0xff]
    %v144 = vld [vmem:[#allocation13 + $0x28] sm:$0xff]
    %v145 = vld [vmem:[#allocation13 + $0x30] sm:$0xff]
    %v146 = vld [vmem:[#allocation13 + $0x38] sm:$0xff]
    %v147 = vld [vmem:[#allocation13 + $0x40] sm:$0xff]
    %v148 = vld [vmem:[#allocation13 + $0x48] sm:$0xff]
    %v149 = vld [vmem:[#allocation13 + $0x50] sm:$0xff]
    %v150 = vld [vmem:[#allocation13 + $0x58] sm:$0xff]
    %v151 = vld [vmem:[#allocation13 + $0x60] sm:$0xff]
    %v152 = vld [vmem:[#allocation13 + $0x68] sm:$0xff]
    %v153 = vld [vmem:[#allocation13 + $0x70] sm:$0xff]
    %v154 = vld [vmem:[#allocation13 + $0x78] sm:$0xff]
    %v155 = vld [vmem:[%s8] sm:$0x1]
    %v157 = vperm.slane %v155, 0
    %159 = vmatpush.msra.mxu0 %v154
    %160 = vmatpush.msra.mxu0 %v153
    %161 = vmatpush.msra.mxu0 %v152
    %162 = vmatpush.msra.mxu0 %v151
    %163 = vmatpush.msra.mxu0 %v150
    %164 = vmatpush.msra.mxu0 %v149
    %165 = vmatpush.msra.mxu0 %v148
    %166 = vmatpush.msra.mxu0 %v147
    %167 = vmatpush.msra.mxu0 %v146
    %168 = vmatpush.msra.mxu0 %v145
    %169 = vmatpush.msra.mxu0 %v144
    %170 = vmatpush.msra.mxu0 %v143
    %171 = vmatpush.msra.mxu0 %v142
    %172 = vmatpush.msra.mxu0 %v141
    %173 = vmatpush.msra.mxu0 %v140
    %174 = vmatpush.msra.mxu0 %v139
    %175 = vmatmul.f32.gmra.mxu0 %v137
    %v176 = vpop.f32.mrf.mxu0
    %v177 = vadd.f32 %v157, %v176
    %178 = vdwg.mxu0
    %v179 = vmin.f32 %v177, 0.0
    %v180 = vmul.f32 %v179, 1.442695
    %v181 = vpow.pop %v180
    %v182 = vmul.f32 %v181, %v138
    %v183 = vld [vmem:[#allocation8] sm:$0xff]
    %v184 = vld [vmem:[#allocation8 + $0x8] sm:$0xff]
    %v185 = vld [vmem:[#allocation8 + $0x10] sm:$0xff]
    %v186 = vld [vmem:[#allocation8 + $0x18] sm:$0xff]
    %v187 = vld [vmem:[#allocation8 + $0x20] sm:$0xff]
    %v188 = vld [vmem:[#allocation8 + $0x28] sm:$0xff]
    %v189 = vld [vmem:[#allocation8 + $0x30] sm:$0xff]
    %v190 = vld [vmem:[#allocation8 + $0x38] sm:$0xff]
    %v191 = vld [vmem:[#allocation8 + $0x40] sm:$0xff]
    %v192 = vld [vmem:[#allocation8 + $0x48] sm:$0xff]
    %v193 = vld [vmem:[#allocation8 + $0x50] sm:$0xff]
    %v194 = vld [vmem:[#allocation8 + $0x58] sm:$0xff]
    %v195 = vld [vmem:[#allocation8 + $0x60] sm:$0xff]
    %v196 = vld [vmem:[#allocation8 + $0x68] sm:$0xff]
    %v197 = vld [vmem:[#allocation8 + $0x70] sm:$0xff]
    %v198 = vld [vmem:[#allocation8 + $0x78] sm:$0xff]
    %v199 = vld [vmem:[#allocation8 + $0x80] sm:$0xff]
    %v200 = vld [vmem:[#allocation8 + $0x88] sm:$0xff]
    %v201 = vld [vmem:[#allocation8 + $0x90] sm:$0xff]
    %v202 = vld [vmem:[#allocation8 + $0x98] sm:$0xff]
    %v203 = vld [vmem:[#allocation8 + $0xa0] sm:$0xff]
    %v204 = vld [vmem:[#allocation8 + $0xa8] sm:$0xff]
    %v205 = vld [vmem:[#allocation8 + $0xb0] sm:$0xff]
    %v206 = vld [vmem:[#allocation8 + $0xb8] sm:$0xff]
    %v207 = vld [vmem:[#allocation8 + $0xc0] sm:$0xff]
    %v208 = vld [vmem:[#allocation8 + $0xc8] sm:$0xff]
    %v209 = vld [vmem:[#allocation8 + $0xd0] sm:$0xff]
    %v210 = vld [vmem:[#allocation8 + $0xd8] sm:$0xff]
    %v211 = vld [vmem:[#allocation8 + $0xe0] sm:$0xff]
    %v212 = vld [vmem:[#allocation8 + $0xe8] sm:$0xff]
    %v213 = vld [vmem:[#allocation8 + $0xf0] sm:$0xff]
    %v214 = vld [vmem:[#allocation8 + $0xf8] sm:$0xff]
    %v215 = vld [vmem:[#allocation8 + $0x100] sm:$0xff]
    %v216 = vld [vmem:[#allocation8 + $0x108] sm:$0xff]
    %v217 = vld [vmem:[#allocation8 + $0x110] sm:$0xff]
    %v218 = vld [vmem:[#allocation8 + $0x118] sm:$0xff]
    %v219 = vld [vmem:[#allocation8 + $0x120] sm:$0xff]
    %v220 = vld [vmem:[#allocation8 + $0x128] sm:$0xff]
    %v221 = vld [vmem:[#allocation8 + $0x130] sm:$0xff]
    %v222 = vld [vmem:[#allocation8 + $0x138] sm:$0xff]
    %v223 = vld [vmem:[#allocation8 + $0x140] sm:$0xff]
    %v224 = vld [vmem:[#allocation8 + $0x148] sm:$0xff]
    %v225 = vld [vmem:[#allocation8 + $0x150] sm:$0xff]
    %v226 = vld [vmem:[#allocation8 + $0x158] sm:$0xff]
    %v227 = vld [vmem:[#allocation8 + $0x160] sm:$0xff]
    %v228 = vld [vmem:[#allocation8 + $0x168] sm:$0xff]
    %v229 = vld [vmem:[#allocation8 + $0x170] sm:$0xff]
    %v230 = vld [vmem:[#allocation8 + $0x178] sm:$0xff]
    %v231 = vld [vmem:[%s4] sm:$0x7]
    %v233 = vperm.slane %v231, 0
    %v234 = vperm.slane %v231, 1
    %v235 = vperm.slane %v231, 2
    %239 = vmatpush.msra.mxu0 %v228
    %240 = vmatpush.msra.mxu0 %v225
    %241 = vmatpush.msra.mxu0 %v222
    %242 = vmatpush.msra.mxu0 %v219
    %243 = vmatpush.msra.mxu0 %v216
    %244 = vmatpush.msra.mxu0 %v213
    %245 = vmatpush.msra.mxu0 %v210
    %246 = vmatpush.msra.mxu0 %v207
    %247 = vmatpush.msra.mxu0 %v204
    %248 = vmatpush.msra.mxu0 %v201
    %249 = vmatpush.msra.mxu0 %v198
    %250 = vmatpush.msra.mxu0 %v195
    %251 = vmatpush.msra.mxu0 %v192
    %252 = vmatpush.msra.mxu0 %v189
    %253 = vmatpush.msra.mxu0 %v186
    %254 = vmatpush.msra.mxu0 %v183
    %255 = vmatmul.f32.gmra.mxu0 %v136
    %v256 = vpop.f32.mrf.mxu0
    %v257 = vadd.f32 %v233, %v256
    %258 = vdwg.mxu0
    %259 = vmatpush.msra.mxu0 %v229
    %260 = vmatpush.msra.mxu0 %v226
    %261 = vmatpush.msra.mxu0 %v223
    %262 = vmatpush.msra.mxu0 %v220
    %263 = vmatpush.msra.mxu0 %v217
    %264 = vmatpush.msra.mxu0 %v214
    %265 = vmatpush.msra.mxu0 %v211
    %266 = vmatpush.msra.mxu0 %v208
    %267 = vmatpush.msra.mxu0 %v205
    %268 = vmatpush.msra.mxu0 %v202
    %269 = vmatpush.msra.mxu0 %v199
    %270 = vmatpush.msra.mxu0 %v196
    %271 = vmatpush.msra.mxu0 %v193
    %272 = vmatpush.msra.mxu0 %v190
    %273 = vmatpush.msra.mxu0 %v187
    %274 = vmatpush.msra.mxu0 %v184
    %275 = vmatmul.f32.gmra.mxu0 %v136
    %v276 = vpop.f32.mrf.mxu0
    %v277 = vadd.f32 %v234, %v276
    %278 = vdwg.mxu0
    %279 = vmatpush.msra.mxu0 %v230
    %280 = vmatpush.msra.mxu0 %v227
    %281 = vmatpush.msra.mxu0 %v224
    %282 = vmatpush.msra.mxu0 %v221
    %283 = vmatpush.msra.mxu0 %v218
    %284 = vmatpush.msra.mxu0 %v215
    %285 = vmatpush.msra.mxu0 %v212
    %286 = vmatpush.msra.mxu0 %v209
    %287 = vmatpush.msra.mxu0 %v206
    %288 = vmatpush.msra.mxu0 %v203
    %289 = vmatpush.msra.mxu0 %v200
    %290 = vmatpush.msra.mxu0 %v197
    %291 = vmatpush.msra.mxu0 %v194
    %292 = vmatpush.msra.mxu0 %v191
    %293 = vmatpush.msra.mxu0 %v188
    %294 = vmatpush.msra.mxu0 %v185
    %295 = vmatmul.f32.gmra.mxu0 %v136
    %v296 = vpop.f32.mrf.mxu0
    %v297 = vadd.f32 %v235, %v296
    %298 = vdwg.mxu0
    %v299 = vld [vmem:[#allocation10] sm:$0xff]
    %v300 = vld [vmem:[#allocation10 + $0x8] sm:$0xff]
    %v301 = vld [vmem:[#allocation10 + $0x10] sm:$0xff]
    %v302 = vld [vmem:[#allocation10 + $0x18] sm:$0xff]
    %v303 = vld [vmem:[#allocation10 + $0x20] sm:$0xff]
    %v304 = vld [vmem:[#allocation10 + $0x28] sm:$0xff]
    %v305 = vld [vmem:[#allocation10 + $0x30] sm:$0xff]
    %v306 = vld [vmem:[#allocation10 + $0x38] sm:$0xff]
    %v307 = vld [vmem:[#allocation10 + $0x40] sm:$0xff]
    %v308 = vld [vmem:[#allocation10 + $0x48] sm:$0xff]
    %v309 = vld [vmem:[#allocation10 + $0x50] sm:$0xff]
    %v310 = vld [vmem:[#allocation10 + $0x58] sm:$0xff]
    %v311 = vld [vmem:[#allocation10 + $0x60] sm:$0xff]
    %v312 = vld [vmem:[#allocation10 + $0x68] sm:$0xff]
    %v313 = vld [vmem:[#allocation10 + $0x70] sm:$0xff]
    %v314 = vld [vmem:[#allocation10 + $0x78] sm:$0xff]
    %v315 = vld [vmem:[#allocation10 + $0x80] sm:$0xff]
    %v316 = vld [vmem:[#allocation10 + $0x88] sm:$0xff]
    %v317 = vld [vmem:[#allocation10 + $0x90] sm:$0xff]
    %v318 = vld [vmem:[#allocation10 + $0x98] sm:$0xff]
    %v319 = vld [vmem:[#allocation10 + $0xa0] sm:$0xff]
    %v320 = vld [vmem:[#allocation10 + $0xa8] sm:$0xff]
    %v321 = vld [vmem:[#allocation10 + $0xb0] sm:$0xff]
    %v322 = vld [vmem:[#allocation10 + $0xb8] sm:$0xff]
    %v323 = vld [vmem:[#allocation10 + $0xc0] sm:$0xff]
    %v324 = vld [vmem:[#allocation10 + $0xc8] sm:$0xff]
    %v325 = vld [vmem:[#allocation10 + $0xd0] sm:$0xff]
    %v326 = vld [vmem:[#allocation10 + $0xd8] sm:$0xff]
    %v327 = vld [vmem:[#allocation10 + $0xe0] sm:$0xff]
    %v328 = vld [vmem:[#allocation10 + $0xe8] sm:$0xff]
    %v329 = vld [vmem:[#allocation10 + $0xf0] sm:$0xff]
    %v330 = vld [vmem:[#allocation10 + $0xf8] sm:$0xff]
    %331 = vmatpush.msra.mxu0 %v329
    %332 = vmatpush.msra.mxu0 %v327
    %333 = vmatpush.msra.mxu0 %v325
    %334 = vmatpush.msra.mxu0 %v323
    %335 = vmatpush.msra.mxu0 %v321
    %336 = vmatpush.msra.mxu0 %v319
    %337 = vmatpush.msra.mxu0 %v317
    %338 = vmatpush.msra.mxu0 %v315
    %339 = vmatpush.msra.mxu0 %v313
    %340 = vmatpush.msra.mxu0 %v311
    %341 = vmatpush.msra.mxu0 %v309
    %342 = vmatpush.msra.mxu0 %v307
    %343 = vmatpush.msra.mxu0 %v305
    %344 = vmatpush.msra.mxu0 %v303
    %345 = vmatpush.msra.mxu0 %v301
    %346 = vmatpush.msra.mxu0 %v299
    %347 = vmatmul.f32.gmra.mxu0 %v182
    %v348 = vpop.f32.mrf.mxu0
    %v349 = vadd.f32 0.0, %v348
    %350 = vdwg.mxu0
    %351 = vmatpush.msra.mxu0 %v330
    %352 = vmatpush.msra.mxu0 %v328
    %353 = vmatpush.msra.mxu0 %v326
    %354 = vmatpush.msra.mxu0 %v324
    %355 = vmatpush.msra.mxu0 %v322
    %356 = vmatpush.msra.mxu0 %v320
    %357 = vmatpush.msra.mxu0 %v318
    %358 = vmatpush.msra.mxu0 %v316
    %359 = vmatpush.msra.mxu0 %v314
    %360 = vmatpush.msra.mxu0 %v312
    %361 = vmatpush.msra.mxu0 %v310
    %362 = vmatpush.msra.mxu0 %v308
    %363 = vmatpush.msra.mxu0 %v306
    %364 = vmatpush.msra.mxu0 %v304
    %365 = vmatpush.msra.mxu0 %v302
    %366 = vmatpush.msra.mxu0 %v300
    %367 = vmatmul.f32.gmra.mxu0 %v182
    %v368 = vpop.f32.mrf.mxu0
    %v369 = vadd.f32 0.0, %v368
    %370 = vdwg.mxu0
    %v371 = vadd.f32 %v257, %v349
    %v372 = vxor.u32 %v371, 2147483648
    %v373 = vmul.f32 %v372, 1.442695
    %v374 = vpow.pop %v373
    %v375 = vadd.f32 %v374, 1.0
    %v376 = vrcp.pop %v375
    %v377 = vmul.f32 %v375, %v376
    %v378 = vsub.f32 1.0, %v377
    %v379 = vmul.f32 %v376, %v378
    %v380 = vadd.f32 %v376, %v379
    %vm381 = vweird.f32 %v375
    %vm382 = vweird.f32 %v376
    %vm383 = vmor %vm381, %vm382
    %v384 = vsel %vm383, %v376, %v380
    %v385 = vand.u32 2147483647, %v375
    %vm386 = vcmp.eq.f32.partialorder %v385, 8.507059e+37
    %v387 = vand.u32 %v375, 2147483648
    %v388 = vor.u32 1.1754944e-38, %v387
    %v389 = vsel %vm386, %v388, %v384
    %v390 = vmul.f32 1.0, %v389
    %v391 = vadd.f32 %v277, %v369
    %v392 = vxor.u32 %v391, 2147483648
    %v393 = vmul.f32 %v392, 1.442695
    %v394 = vpow.pop %v393
    %v395 = vadd.f32 %v394, 1.0
    %v396 = vrcp.pop %v395
    %v397 = vmul.f32 %v395, %v396
    %v398 = vsub.f32 1.0, %v397
    %v399 = vmul.f32 %v396, %v398
    %v400 = vadd.f32 %v396, %v399
    %vm401 = vweird.f32 %v395
    %vm402 = vweird.f32 %v396
    %vm403 = vmor %vm401, %vm402
    %v404 = vsel %vm403, %v396, %v400
    %v405 = vand.u32 2147483647, %v395
    %vm406 = vcmp.eq.f32.partialorder %v405, 8.507059e+37
    %v407 = vand.u32 %v395, 2147483648
    %v408 = vor.u32 1.1754944e-38, %v407
    %v409 = vsel %vm406, %v408, %v404
    %v410 = vmul.f32 1.0, %v409
    %v411 = vmul.f32 %v410, %v182
    %v412 = vld [vmem:[#allocation11] sm:$0xff]
    %v413 = vld [vmem:[#allocation11 + $0x8] sm:$0xff]
    %v414 = vld [vmem:[#allocation11 + $0x10] sm:$0xff]
    %v415 = vld [vmem:[#allocation11 + $0x18] sm:$0xff]
    %v416 = vld [vmem:[#allocation11 + $0x20] sm:$0xff]
    %v417 = vld [vmem:[#allocation11 + $0x28] sm:$0xff]
    %v418 = vld [vmem:[#allocation11 + $0x30] sm:$0xff]
    %v419 = vld [vmem:[#allocation11 + $0x38] sm:$0xff]
    %v420 = vld [vmem:[#allocation11 + $0x40] sm:$0xff]
    %v421 = vld [vmem:[#allocation11 + $0x48] sm:$0xff]
    %v422 = vld [vmem:[#allocation11 + $0x50] sm:$0xff]
    %v423 = vld [vmem:[#allocation11 + $0x58] sm:$0xff]
    %v424 = vld [vmem:[#allocation11 + $0x60] sm:$0xff]
    %v425 = vld [vmem:[#allocation11 + $0x68] sm:$0xff]
    %v426 = vld [vmem:[#allocation11 + $0x70] sm:$0xff]
    %v427 = vld [vmem:[#allocation11 + $0x78] sm:$0xff]
    %428 = vmatpush.msra.mxu0 %v427
    %429 = vmatpush.msra.mxu0 %v426
    %430 = vmatpush.msra.mxu0 %v425
    %431 = vmatpush.msra.mxu0 %v424
    %432 = vmatpush.msra.mxu0 %v423
    %433 = vmatpush.msra.mxu0 %v422
    %434 = vmatpush.msra.mxu0 %v421
    %435 = vmatpush.msra.mxu0 %v420
    %436 = vmatpush.msra.mxu0 %v419
    %437 = vmatpush.msra.mxu0 %v418
    %438 = vmatpush.msra.mxu0 %v417
    %439 = vmatpush.msra.mxu0 %v416
    %440 = vmatpush.msra.mxu0 %v415
    %441 = vmatpush.msra.mxu0 %v414
    %442 = vmatpush.msra.mxu0 %v413
    %443 = vmatpush.msra.mxu0 %v412
    %444 = vmatmul.f32.gmra.mxu0 %v411
    %v445 = vpop.f32.mrf.mxu0
    %v446 = vadd.f32 0.0, %v445
    %447 = vdwg.mxu0
    %v448 = vadd.f32 %v297, %v446
    %v449 = vtanh.pop %v448
    %v450 = vmul.f32 %v390, %v182
    %v451 = vsub.f32 1.0, %v390
    %v452 = vmul.f32 %v451, %v449
    %v453 = vadd.f32 %v450, %v452
    %454 = vst [vmem:[#allocation14] sm:$0xff] %v453
    // Predicated region
    $region66: #{tpu_custom_call.1} parent=1 // pred_check
      _
    $region67: #{tpu_custom_call.1} parent=1 // pred_check_branch
      %456 = sbr.rel (0) target = $region69
    $region68: #{tpu_custom_call.1} parent=1 // pred_region
      %458 = vsyncadd [#allocation4], 0
      %s460 = sshll.u32 [#allocation14], 4
      %s461 = int_to_ptr.vmem [resolvable:$true] %s460
      %s462 = sshll.u32 %s9, 4
      %s463 = int_to_ptr.hbm [resolvable:$true] %s462
      %465 = dma.vmem_to_hbm [thread:$0]  %s461, 128, %s463, [#allocation4]
    $region69: #{tpu_custom_call.1} parent=1 // pred_fallthru
      _
    // Predicated region
    $region70: #{tpu_custom_call.1} parent=1 // pred_check
      _
    $region71: #{tpu_custom_call.1} parent=1 // pred_check_branch
      %467 = sbr.rel (0) target = $region73
    $region72: #{tpu_custom_call.1} parent=1 // pred_region
      %469 = dma.done [#allocation4], 128
    $region73: #{tpu_custom_call.1} parent=1 // pred_fallthru
      _
    %470 = vsyncpa [#allocation3], 1
    %471 = vsyncpa [#allocation6], 1
    %472 = vsyncpa [#allocation9], 1
    %473 = vsyncpa [#allocation12], 1
    %474 = vsyncpa [#allocation4], 1

</llo_original>
